<compile_context>
chip_gen: v5e
topology: v5e:2x2
jax: 0.10.0
libtpu: 0.0.40
codegen_flags: <defaults>
</compile_context>

<pallas_src>
import functools

import jax
import jax.numpy as jnp
from jax.experimental import pallas as pl
from jax.experimental.pallas import tpu as pltpu


def _round_up(x, m):
    return ((x + m - 1) // m) * m


# ---------------------- small-parameter slab slot layout ----------------------
_SLOT_LN1_G, _SLOT_LN1_B = 0, 1
_SLOT_LN2_G, _SLOT_LN2_B = 2, 3
_SLOT_LNF_G, _SLOT_LNF_B = 4, 5
_SLOT_B_PROJ = 6
_SLOT_B_MLP1 = 7
_SLOT_B_MLP2 = 8
_SLOT_B_FC = 9
_SLOT_B_Q = 10          # heads q-bias slots, then heads v-bias slots follow


# ----------------------------- fused Pallas kernel ----------------------------

def _fused_vit_kernel(
    patches_ref,   # [R, PATCH_DIM] f32   (R = B*S_PAD; CLS/pad rows are zero)
    seq_add_ref,   # [R, D]         f32   (cls + pos + patch bias, pre-merged)
    mask_ref,      # [R, R]         f32   additive attention bias (0 / -1e30)
    pslab_ref,     # [N_SLOTS, 128] f32   packed small params
    w_patch_ref,   # [PATCH_DIM, D] bf16
    w_heads_ref,   # [3*heads, D, dh] bf16  (per-head Wq (pre-scaled), Wk, Wv)
    w_proj_ref,    # [D, D]         bf16
    w_mlp1_ref,    # [D, MLP]       bf16
    w_mlp2_ref,    # [MLP, D]       bf16
    w_fc_ref,      # [D, NCLS_PAD]  bf16
    logits_ref,    # [B, NCLS_PAD]  f32   (output)
    *, heads, dh, batch, s_pad, eps,
):
    f32, bf16 = jnp.float32, jnp.bfloat16
    D = w_patch_ref.shape[1]
    MLP = w_mlp1_ref.shape[1]

    def prow(slot, width):                       # [1, width] static slab read
        return pslab_ref[slot:slot + 1, 0:width]

    def layernorm(x, g_slot, b_slot):            # single-pass mean / E[x^2]
        mean = jnp.mean(x, axis=-1, keepdims=True)
        ex2 = jnp.mean(x * x, axis=-1, keepdims=True)
        var = ex2 - mean * mean
        xn = (x - mean) * jax.lax.rsqrt(var + eps)
        w = x.shape[-1]
        return xn * prow(g_slot, w) + prow(b_slot, w)

    def mxu(x, w):                               # bf16 operands, f32 accumulation
        return jax.lax.dot_general(x.astype(bf16), w,
                                   (((1,), (0,)), ((), ())),
                                   preferred_element_type=f32)

    # --- patch embedding + CLS token + positional embedding -------------------
    seq = mxu(patches_ref[...], w_patch_ref[...]) + seq_add_ref[...]   # [R, D] f32

    # --- attention branch (whole batch at once, per-image block mask) ---------
    h1 = layernorm(seq, _SLOT_LN1_G, _SLOT_LN1_B).astype(bf16)
    mask = mask_ref[...]
    for h in range(heads):                       # static unroll over heads
        wq = w_heads_ref[3 * h + 0]              # [D, dh] bf16 (scale pre-folded)
        wk = w_heads_ref[3 * h + 1]
        wv = w_heads_ref[3 * h + 2]
        qh = jax.lax.dot_general(h1, wq, (((1,), (0,)), ((), ())),
                                 preferred_element_type=f32) + prow(_SLOT_B_Q + h, dh)
        # k bias dropped: a per-query-row constant score shift is softmax-invariant.
        kh = jax.lax.dot_general(h1, wk, (((1,), (0,)), ((), ())),
                                 preferred_element_type=f32)
        vh = jax.lax.dot_general(h1, wv, (((1,), (0,)), ((), ())),
                                 preferred_element_type=f32) + prow(_SLOT_B_Q + heads + h, dh)
        s = jax.lax.dot_general(qh.astype(bf16), kh.astype(bf16),
                                (((1,), (1,)), ((), ())),
                                preferred_element_type=f32) + mask     # [R, R]
        m = jnp.max(s, axis=-1, keepdims=True)
        p = jnp.exp(s - m)
        denom = jnp.sum(p, axis=-1, keepdims=True)
        oh = jax.lax.dot_general(p.astype(bf16), vh.astype(bf16),
                                 (((1,), (0,)), ((), ())),
                                 preferred_element_type=f32)           # [R, dh]
        oh = oh * pl.reciprocal(denom, approx=True)
        # per-head projection + accumulate (avoids lane-concat of head outputs)
        wp = w_proj_ref[h * dh:(h + 1) * dh, :]                        # [dh, D] bf16
        seq = seq + jax.lax.dot_general(oh.astype(bf16), wp,
                                        (((1,), (0,)), ((), ())),
                                        preferred_element_type=f32)
    seq = seq + prow(_SLOT_B_PROJ, D)

    # --- MLP branch -------------------------------------------------------------
    h2 = layernorm(seq, _SLOT_LN2_G, _SLOT_LN2_B)
    m1 = mxu(h2, w_mlp1_ref[...]) + prow(_SLOT_B_MLP1, MLP)
    # TODO(synk): PyTorch nn.GELU defaults to exact erf; tanh approximation used here.
    m1 = jax.nn.gelu(m1, approximate=True)
    seq = seq + mxu(m1, w_mlp2_ref[...]) + prow(_SLOT_B_MLP2, D)

    # --- final LayerNorm on CLS rows + classifier head ---------------------------
    cls = jnp.concatenate(
        [seq[b * s_pad:b * s_pad + 1, :] for b in range(batch)], axis=0)  # [B, D]
    cls = layernorm(cls, _SLOT_LNF_G, _SLOT_LNF_B)
    ncls_pad = logits_ref.shape[-1]
    logits = mxu(cls, w_fc_ref[...]) + prow(_SLOT_B_FC, ncls_pad)
    logits_ref[...] = logits.astype(logits_ref.dtype)


# ------------------------- deterministic parameters ----------------------------

def init_params(key, *, C, P, D, mlp_dim, num_classes, num_patches):
    ks = jax.random.split(key, 16)
    patch_dim = C * P * P
    s = 0.02
    return {
        "w_patch": jax.random.normal(ks[0], (patch_dim, D), jnp.float32) * s,
        "b_patch": jnp.zeros((D,), jnp.float32),
        "cls_token": jax.random.normal(ks[1], (1, 1, D), jnp.float32) * s,
        "pos_emb": jax.random.normal(ks[2], (1, num_patches + 1, D), jnp.float32) * s,
        "ln1_g": jnp.ones((D,), jnp.float32),
        "ln1_b": jnp.zeros((D,), jnp.float32),
        "w_qkv": jax.random.normal(ks[3], (D, 3 * D), jnp.float32) * s,
        "b_qkv": jnp.zeros((3 * D,), jnp.float32),
        "w_proj": jax.random.normal(ks[4], (D, D), jnp.float32) * s,
        "b_proj": jnp.zeros((D,), jnp.float32),
        "ln2_g": jnp.ones((D,), jnp.float32),
        "ln2_b": jnp.zeros((D,), jnp.float32),
        "w_mlp1": jax.random.normal(ks[5], (D, mlp_dim), jnp.float32) * s,
        "b_mlp1": jnp.zeros((mlp_dim,), jnp.float32),
        "w_mlp2": jax.random.normal(ks[6], (mlp_dim, D), jnp.float32) * s,
        "b_mlp2": jnp.zeros((D,), jnp.float32),
        "lnf_g": jnp.ones((D,), jnp.float32),
        "lnf_b": jnp.zeros((D,), jnp.float32),
        # classifier head (ModelVit.fc = Linear(feature_dim, num_classes))
        "w_fc": jax.random.normal(ks[7], (D, num_classes), jnp.float32) * s,
        "b_fc": jax.random.normal(ks[8], (num_classes,), jnp.float32) * s,
    }


# ---------------------- one-time, batch-independent host prep -------------------

def prepare_inputs(params, *, batch, img_shape, patch, heads, num_classes):
    f32, bf16 = jnp.float32, jnp.bfloat16
    C, H, W = img_shape
    D = params["w_patch"].shape[1]
    nH, nW = H // patch, W // patch
    n_patch = nH * nW
    S = n_patch + 1
    S_PAD = _round_up(S, 8)
    R = batch * S_PAD
    dh = D // heads
    NCLS_PAD = _round_up(num_classes, 128)
    assert num_classes <= 128, "param slab packs b_fc into a single 128-lane slot"

    # additive slab: cls token + positional embedding + patch-embed bias, tiled over B
    seq_add = jnp.zeros((S_PAD, D), f32)
    seq_add = seq_add.at[0].set(params["cls_token"][0, 0] + params["pos_emb"][0, 0])
    seq_add = seq_add.at[1:S].set(params["pos_emb"][0, 1:S] + params["b_patch"][None, :])
    seq_add = jnp.tile(seq_add, (batch, 1))                               # [R, D]

    # additive attention bias: 0 within same image & valid key column, -1e30 otherwise
    row_img = jnp.arange(R) // S_PAD
    col_local = jnp.arange(R) % S_PAD
    keep = (row_img[:, None] == row_img[None, :]) & (col_local[None, :] < S)
    mask_bias = jnp.where(keep, 0.0, -1e30).astype(f32)                   # [R, R]

    # per-head q/k/v weight blocks; fold 1/sqrt(dh) into Q; K bias is dropped.
    scale = 1.0 / float(dh) ** 0.5
    wq = params["w_qkv"][:, 0 * D:1 * D] * scale
    wk = params["w_qkv"][:, 1 * D:2 * D]
    wv = params["w_qkv"][:, 2 * D:3 * D]
    blocks = []
    for h in range(heads):
        sl = slice(h * dh, (h + 1) * dh)
        blocks += [wq[:, sl], wk[:, sl], wv[:, sl]]
    w_heads = jnp.stack(blocks, axis=0).astype(bf16)                      # [3*heads, D, dh]

    # packed small-parameter slab (one 128-lane slot per vector)
    n_slots = _SLOT_B_Q + 2 * heads
    pslab = jnp.zeros((_round_up(n_slots, 8), 128), f32)

    def put(slab, slot, vec):
        return slab.at[slot, :vec.shape[0]].set(vec.astype(f32))

    pslab = put(pslab, _SLOT_LN1_G, params["ln1_g"])
    pslab = put(pslab, _SLOT_LN1_B, params["ln1_b"])
    pslab = put(pslab, _SLOT_LN2_G, params["ln2_g"])
    pslab = put(pslab, _SLOT_LN2_B, params["ln2_b"])
    pslab = put(pslab, _SLOT_LNF_G, params["lnf_g"])
    pslab = put(pslab, _SLOT_LNF_B, params["lnf_b"])
    pslab = put(pslab, _SLOT_B_PROJ, params["b_proj"])
    pslab = put(pslab, _SLOT_B_MLP1, params["b_mlp1"])
    pslab = put(pslab, _SLOT_B_MLP2, params["b_mlp2"])
    pslab = put(pslab, _SLOT_B_FC, params["b_fc"])
    b_q = params["b_qkv"][0 * D:1 * D] * scale
    b_v = params["b_qkv"][2 * D:3 * D]
    for h in range(heads):
        sl = slice(h * dh, (h + 1) * dh)
        pslab = put(pslab, _SLOT_B_Q + h, b_q[sl])
        pslab = put(pslab, _SLOT_B_Q + heads + h, b_v[sl])

    w_fc_pad = jnp.zeros((D, NCLS_PAD), bf16).at[:, :num_classes].set(
        params["w_fc"].astype(bf16))

    return {
        "seq_add": seq_add,
        "mask_bias": mask_bias,
        "pslab": pslab,
        "w_patch": params["w_patch"].astype(bf16),
        "w_heads": w_heads,
        "w_proj": params["w_proj"].astype(bf16),
        "w_mlp1": params["w_mlp1"].astype(bf16),
        "w_mlp2": params["w_mlp2"].astype(bf16),
        "w_fc": w_fc_pad,
    }


# ------------------------------ forward pass ------------------------------------

def model_vit_forward(prep, images, *, patch, heads, num_classes):
    """Equivalent of ModelVit.forward: logits = fc(model(images))."""
    f32 = jnp.float32
    B, C, H, W = images.shape
    D = prep["w_patch"].shape[1]
    nH, nW = H // patch, W // patch
    n_patch = nH * nW
    patch_dim = C * patch * patch
    S = n_patch + 1
    S_PAD = _round_up(S, 8)
    R = B * S_PAD
    NCLS_PAD = _round_up(num_classes, 128)
    dh = D // heads

    # per-call XLA glue: patchify only (everything else is hoisted into prepare_inputs)
    x = images.reshape(B, C, nH, patch, nW, patch)
    x = x.transpose(0, 2, 4, 1, 3, 5).reshape(B, n_patch, patch_dim)
    patches = jnp.zeros((B, S_PAD, patch_dim), f32)
    patches = patches.at[:, 1:1 + n_patch, :].set(x).reshape(R, patch_dim)

    kernel = functools.partial(_fused_vit_kernel, heads=heads, dh=dh,
                               batch=B, s_pad=S_PAD, eps=1e-5)

    args = (patches, prep["seq_add"], prep["mask_bias"], prep["pslab"],
            prep["w_patch"], prep["w_heads"], prep["w_proj"],
            prep["w_mlp1"], prep["w_mlp2"], prep["w_fc"])

    def full_spec(shape):
        zeros = (0,) * len(shape)
        return pl.BlockSpec(shape, lambda i: zeros)

    # Whole batch in a single grid step: the grid is a serial loop on v5e/v6e, so
    # B separate steps would just multiply fixed per-step overhead at these tiny shapes.
    # TODO(synk): for v7x (2 TensorCores) with larger B, split the batch across a
    # leading "parallel" grid axis of size 2 instead.
    logits_pad = pl.pallas_call(
        kernel,
        out_shape=jax.ShapeDtypeStruct((B, NCLS_PAD), f32),
        grid=(1,),
        in_specs=[full_spec(a.shape) for a in args],
        out_specs=full_spec((B, NCLS_PAD)),
        compiler_params=pltpu.CompilerParams(dimension_semantics=("arbitrary",)),
    )(*args)

    return logits_pad[:, :num_classes]


# ----------------------------------- main ----------------------------------------

if __name__ == "__main__":
    B, C, H, W = 2, 4, 16, 16
    P = 4                      # patch size -> 16 patches (+ CLS = 17 tokens)
    D = 32                     # feature_dim
    HEADS = 2
    MLP = 64
    NUM_CLASSES = 10
    NUM_PATCHES = (H // P) * (W // P)

    key = jax.random.PRNGKey(0)
    k_img, k_par = jax.random.split(key)
    images = jax.random.normal(k_img, (B, C, H, W), jnp.float32)
    params = init_params(k_par, C=C, P=P, D=D, mlp_dim=MLP,
                         num_classes=NUM_CLASSES, num_patches=NUM_PATCHES)

    # one-time, batch-independent weight/layout preparation (hoisted off the hot path)
    prep = prepare_inputs(params, batch=B, img_shape=(C, H, W), patch=P,
                          heads=HEADS, num_classes=NUM_CLASSES)
    prep = jax.block_until_ready(prep)

    fwd = jax.jit(functools.partial(model_vit_forward, patch=P, heads=HEADS,
                                    num_classes=NUM_CLASSES))
    logits = fwd(prep, images)
    jax.block_until_ready(logits)

    assert logits.shape == (B, NUM_CLASSES), logits.shape
    assert bool(jnp.all(jnp.isfinite(logits)))
    print("KERNEL_OK")
</pallas_src>

<mosaic_0001>
module attributes {stable_mosaic.version = 11 : i64} {
  func.func @_fused_vit_kernel(%arg0: i32, %arg1: memref<48x64xf32, #tpu.memory_space<vmem>>, %arg2: memref<48x32xf32, #tpu.memory_space<vmem>>, %arg3: memref<48x48xf32, #tpu.memory_space<vmem>>, %arg4: memref<16x128xf32, #tpu.memory_space<vmem>>, %arg5: memref<64x32xbf16, #tpu.memory_space<vmem>>, %arg6: memref<6x32x16xbf16, #tpu.memory_space<vmem>>, %arg7: memref<32x32xbf16, #tpu.memory_space<vmem>>, %arg8: memref<32x64xbf16, #tpu.memory_space<vmem>>, %arg9: memref<64x32xbf16, #tpu.memory_space<vmem>>, %arg10: memref<32x128xbf16, #tpu.memory_space<vmem>>, %arg11: memref<2x128xf32, #tpu.memory_space<vmem>>) attributes {dimension_semantics = [#tpu.dimension_semantics<arbitrary>], iteration_bounds = array<i64: 1>, scalar_prefetch = 0 : i64, scratch_operands = 0 : i64, tpu.core_type = #tpu.core_type<tc>, window_params = [{pipeline_mode = #tpu.pipeline_mode<synchronous>, transform_indices = @transform_0, window_bounds = array<i64: 48, 64>}, {pipeline_mode = #tpu.pipeline_mode<synchronous>, transform_indices = @transform_1, window_bounds = array<i64: 48, 32>}, {pipeline_mode = #tpu.pipeline_mode<synchronous>, transform_indices = @transform_2, window_bounds = array<i64: 48, 48>}, {pipeline_mode = #tpu.pipeline_mode<synchronous>, transform_indices = @transform_3, window_bounds = array<i64: 16, 128>}, {pipeline_mode = #tpu.pipeline_mode<synchronous>, transform_indices = @transform_4, window_bounds = array<i64: 64, 32>}, {pipeline_mode = #tpu.pipeline_mode<synchronous>, transform_indices = @transform_5, window_bounds = array<i64: 6, 32, 16>}, {pipeline_mode = #tpu.pipeline_mode<synchronous>, transform_indices = @transform_6, window_bounds = array<i64: 32, 32>}, {pipeline_mode = #tpu.pipeline_mode<synchronous>, transform_indices = @transform_7, window_bounds = array<i64: 32, 64>}, {pipeline_mode = #tpu.pipeline_mode<synchronous>, transform_indices = @transform_8, window_bounds = array<i64: 64, 32>}, {pipeline_mode = #tpu.pipeline_mode<synchronous>, transform_indices = @transform_9, window_bounds = array<i64: 32, 128>}, {pipeline_mode = #tpu.pipeline_mode<synchronous>, transform_indices = @transform_10, window_bounds = array<i64: 2, 128>}]} {
    %c0 = arith.constant 0 : index
    %c0_0 = arith.constant 0 : index
    %0 = vector.load %arg1[%c0, %c0_0] : memref<48x64xf32, #tpu.memory_space<vmem>>, vector<48x64xf32>
    %c0_1 = arith.constant 0 : index
    %c0_2 = arith.constant 0 : index
    %1 = vector.load %arg5[%c0_1, %c0_2] : memref<64x32xbf16, #tpu.memory_space<vmem>>, vector<64x32xbf16>
    %2 = arith.truncf %0 : vector<48x64xf32> to vector<48x64xbf16>
    %cst = arith.constant dense<0.000000e+00> : vector<48x32xf32>
    %3 = tpu.matmul %2, %1, %cst {dimension_numbers = #tpu.dot_dimension_numbers<[1], [0], [0], [1], [0, 0, 1, 1], [], []>} : vector<48x64xbf16>, vector<64x32xbf16>, vector<48x32xf32> -> vector<48x32xf32>
    %c0_3 = arith.constant 0 : index
    %c0_4 = arith.constant 0 : index
    %4 = vector.load %arg2[%c0_3, %c0_4] : memref<48x32xf32, #tpu.memory_space<vmem>>, vector<48x32xf32>
    %5 = arith.addf %3, %4 : vector<48x32xf32>
    %cst_5 = arith.constant dense<0.000000e+00> : vector<48xf32>
    %6 = vector.multi_reduction <add>, %5, %cst_5 [1] : vector<48x32xf32> to vector<48xf32>
    %7 = vector.shape_cast %6 : vector<48xf32> to vector<48x1xf32>
    %cst_6 = arith.constant 3.200000e+01 : f32
    %8 = vector.broadcast %cst_6 : f32 to vector<48x1xf32>
    %9 = arith.divf %7, %8 : vector<48x1xf32>
    %10 = arith.mulf %5, %5 : vector<48x32xf32>
    %cst_7 = arith.constant dense<0.000000e+00> : vector<48xf32>
    %11 = vector.multi_reduction <add>, %10, %cst_7 [1] : vector<48x32xf32> to vector<48xf32>
    %12 = vector.shape_cast %11 : vector<48xf32> to vector<48x1xf32>
    %cst_8 = arith.constant 3.200000e+01 : f32
    %13 = vector.broadcast %cst_8 : f32 to vector<48x1xf32>
    %14 = arith.divf %12, %13 : vector<48x1xf32>
    %15 = arith.mulf %9, %9 : vector<48x1xf32>
    %16 = arith.subf %14, %15 : vector<48x1xf32>
    %17 = vector.broadcast %9 : vector<48x1xf32> to vector<48x32xf32>
    %18 = arith.subf %5, %17 : vector<48x32xf32>
    %cst_9 = arith.constant 9.99999974E-6 : f32
    %19 = vector.broadcast %cst_9 : f32 to vector<48x1xf32>
    %20 = arith.addf %16, %19 : vector<48x1xf32>
    %21 = math.rsqrt %20 : vector<48x1xf32>
    %22 = vector.broadcast %21 : vector<48x1xf32> to vector<48x32xf32>
    %23 = arith.mulf %18, %22 : vector<48x32xf32>
    %c0_10 = arith.constant 0 : index
    %c0_11 = arith.constant 0 : index
    %24 = vector.load %arg4[%c0_10, %c0_11] : memref<16x128xf32, #tpu.memory_space<vmem>>, vector<1x32xf32>
    %25 = vector.broadcast %24 : vector<1x32xf32> to vector<48x32xf32>
    %26 = arith.mulf %23, %25 : vector<48x32xf32>
    %c1 = arith.constant 1 : index
    %c0_12 = arith.constant 0 : index
    %27 = vector.load %arg4[%c1, %c0_12] : memref<16x128xf32, #tpu.memory_space<vmem>>, vector<1x32xf32>
    %28 = vector.broadcast %27 : vector<1x32xf32> to vector<48x32xf32>
    %29 = arith.addf %26, %28 : vector<48x32xf32>
    %30 = arith.truncf %29 : vector<48x32xf32> to vector<48x32xbf16>
    %c0_13 = arith.constant 0 : index
    %c0_14 = arith.constant 0 : index
    %31 = vector.load %arg3[%c0_13, %c0_14] : memref<48x48xf32, #tpu.memory_space<vmem>>, vector<48x48xf32>
    %c0_15 = arith.constant 0 : index
    %c0_16 = arith.constant 0 : index
    %c0_17 = arith.constant 0 : index
    %32 = vector.load %arg6[%c0_15, %c0_16, %c0_17] : memref<6x32x16xbf16, #tpu.memory_space<vmem>>, vector<1x32x16xbf16>
    %33 = vector.shape_cast %32 : vector<1x32x16xbf16> to vector<32x16xbf16>
    %c1_18 = arith.constant 1 : index
    %c0_19 = arith.constant 0 : index
    %c0_20 = arith.constant 0 : index
    %34 = vector.load %arg6[%c1_18, %c0_19, %c0_20] : memref<6x32x16xbf16, #tpu.memory_space<vmem>>, vector<1x32x16xbf16>
    %35 = vector.shape_cast %34 : vector<1x32x16xbf16> to vector<32x16xbf16>
    %c2 = arith.constant 2 : index
    %c0_21 = arith.constant 0 : index
    %c0_22 = arith.constant 0 : index
    %36 = vector.load %arg6[%c2, %c0_21, %c0_22] : memref<6x32x16xbf16, #tpu.memory_space<vmem>>, vector<1x32x16xbf16>
    %37 = vector.shape_cast %36 : vector<1x32x16xbf16> to vector<32x16xbf16>
    %cst_23 = arith.constant dense<0.000000e+00> : vector<48x16xf32>
    %38 = tpu.matmul %30, %33, %cst_23 {dimension_numbers = #tpu.dot_dimension_numbers<[1], [0], [0], [1], [0, 0, 1, 1], [], []>} : vector<48x32xbf16>, vector<32x16xbf16>, vector<48x16xf32> -> vector<48x16xf32>
    %c10 = arith.constant 10 : index
    %c0_24 = arith.constant 0 : index
    %39 = vector.load %arg4[%c10, %c0_24] : memref<16x128xf32, #tpu.memory_space<vmem>>, vector<1x16xf32>
    %40 = vector.broadcast %39 : vector<1x16xf32> to vector<48x16xf32>
    %41 = arith.addf %38, %40 : vector<48x16xf32>
    %cst_25 = arith.constant dense<0.000000e+00> : vector<48x16xf32>
    %42 = tpu.matmul %30, %35, %cst_25 {dimension_numbers = #tpu.dot_dimension_numbers<[1], [0], [0], [1], [0, 0, 1, 1], [], []>} : vector<48x32xbf16>, vector<32x16xbf16>, vector<48x16xf32> -> vector<48x16xf32>
    %cst_26 = arith.constant dense<0.000000e+00> : vector<48x16xf32>
    %43 = tpu.matmul %30, %37, %cst_26 {dimension_numbers = #tpu.dot_dimension_numbers<[1], [0], [0], [1], [0, 0, 1, 1], [], []>} : vector<48x32xbf16>, vector<32x16xbf16>, vector<48x16xf32> -> vector<48x16xf32>
    %c12 = arith.constant 12 : index
    %c0_27 = arith.constant 0 : index
    %44 = vector.load %arg4[%c12, %c0_27] : memref<16x128xf32, #tpu.memory_space<vmem>>, vector<1x16xf32>
    %45 = vector.broadcast %44 : vector<1x16xf32> to vector<48x16xf32>
    %46 = arith.addf %43, %45 : vector<48x16xf32>
    %47 = arith.truncf %41 : vector<48x16xf32> to vector<48x16xbf16>
    %48 = arith.truncf %42 : vector<48x16xf32> to vector<48x16xbf16>
    %cst_28 = arith.constant dense<0.000000e+00> : vector<48x48xf32>
    %49 = tpu.matmul %47, %48, %cst_28 {dimension_numbers = #tpu.dot_dimension_numbers<[1], [1], [0], [0], [0, 0, 1, 0], [], []>} : vector<48x16xbf16>, vector<48x16xbf16>, vector<48x48xf32> -> vector<48x48xf32>
    %50 = arith.addf %49, %31 : vector<48x48xf32>
    %cst_29 = arith.constant dense<0xFF800000> : vector<48xf32>
    %51 = vector.multi_reduction <maximumf>, %50, %cst_29 [1] : vector<48x48xf32> to vector<48xf32>
    %52 = vector.shape_cast %51 : vector<48xf32> to vector<48x1xf32>
    %53 = vector.broadcast %52 : vector<48x1xf32> to vector<48x48xf32>
    %54 = arith.subf %50, %53 : vector<48x48xf32>
    %55 = math.exp %54 : vector<48x48xf32>
    %cst_30 = arith.constant dense<0.000000e+00> : vector<48xf32>
    %56 = vector.multi_reduction <add>, %55, %cst_30 [1] : vector<48x48xf32> to vector<48xf32>
    %57 = vector.shape_cast %56 : vector<48xf32> to vector<48x1xf32>
    %58 = arith.truncf %55 : vector<48x48xf32> to vector<48x48xbf16>
    %59 = arith.truncf %46 : vector<48x16xf32> to vector<48x16xbf16>
    %cst_31 = arith.constant dense<0.000000e+00> : vector<48x16xf32>
    %60 = tpu.matmul %58, %59, %cst_31 {dimension_numbers = #tpu.dot_dimension_numbers<[1], [0], [0], [1], [0, 0, 1, 1], [], []>} : vector<48x48xbf16>, vector<48x16xbf16>, vector<48x16xf32> -> vector<48x16xf32>
    %61 = tpu.reciprocal %57 {approx = true} : vector<48x1xf32> -> vector<48x1xf32>
    %62 = vector.broadcast %61 : vector<48x1xf32> to vector<48x16xf32>
    %63 = arith.mulf %60, %62 : vector<48x16xf32>
    %c0_32 = arith.constant 0 : index
    %c0_33 = arith.constant 0 : index
    %64 = vector.load %arg7[%c0_32, %c0_33] : memref<32x32xbf16, #tpu.memory_space<vmem>>, vector<16x32xbf16>
    %65 = arith.truncf %63 : vector<48x16xf32> to vector<48x16xbf16>
    %cst_34 = arith.constant dense<0.000000e+00> : vector<48x32xf32>
    %66 = tpu.matmul %65, %64, %cst_34 {dimension_numbers = #tpu.dot_dimension_numbers<[1], [0], [0], [1], [0, 0, 1, 1], [], []>} : vector<48x16xbf16>, vector<16x32xbf16>, vector<48x32xf32> -> vector<48x32xf32>
    %67 = arith.addf %5, %66 : vector<48x32xf32>
    %c3 = arith.constant 3 : index
    %c0_35 = arith.constant 0 : index
    %c0_36 = arith.constant 0 : index
    %68 = vector.load %arg6[%c3, %c0_35, %c0_36] : memref<6x32x16xbf16, #tpu.memory_space<vmem>>, vector<1x32x16xbf16>
    %69 = vector.shape_cast %68 : vector<1x32x16xbf16> to vector<32x16xbf16>
    %c4 = arith.constant 4 : index
    %c0_37 = arith.constant 0 : index
    %c0_38 = arith.constant 0 : index
    %70 = vector.load %arg6[%c4, %c0_37, %c0_38] : memref<6x32x16xbf16, #tpu.memory_space<vmem>>, vector<1x32x16xbf16>
    %71 = vector.shape_cast %70 : vector<1x32x16xbf16> to vector<32x16xbf16>
    %c5 = arith.constant 5 : index
    %c0_39 = arith.constant 0 : index
    %c0_40 = arith.constant 0 : index
    %72 = vector.load %arg6[%c5, %c0_39, %c0_40] : memref<6x32x16xbf16, #tpu.memory_space<vmem>>, vector<1x32x16xbf16>
    %73 = vector.shape_cast %72 : vector<1x32x16xbf16> to vector<32x16xbf16>
    %cst_41 = arith.constant dense<0.000000e+00> : vector<48x16xf32>
    %74 = tpu.matmul %30, %69, %cst_41 {dimension_numbers = #tpu.dot_dimension_numbers<[1], [0], [0], [1], [0, 0, 1, 1], [], []>} : vector<48x32xbf16>, vector<32x16xbf16>, vector<48x16xf32> -> vector<48x16xf32>
    %c11 = arith.constant 11 : index
    %c0_42 = arith.constant 0 : index
    %75 = vector.load %arg4[%c11, %c0_42] : memref<16x128xf32, #tpu.memory_space<vmem>>, vector<1x16xf32>
    %76 = vector.broadcast %75 : vector<1x16xf32> to vector<48x16xf32>
    %77 = arith.addf %74, %76 : vector<48x16xf32>
    %cst_43 = arith.constant dense<0.000000e+00> : vector<48x16xf32>
    %78 = tpu.matmul %30, %71, %cst_43 {dimension_numbers = #tpu.dot_dimension_numbers<[1], [0], [0], [1], [0, 0, 1, 1], [], []>} : vector<48x32xbf16>, vector<32x16xbf16>, vector<48x16xf32> -> vector<48x16xf32>
    %cst_44 = arith.constant dense<0.000000e+00> : vector<48x16xf32>
    %79 = tpu.matmul %30, %73, %cst_44 {dimension_numbers = #tpu.dot_dimension_numbers<[1], [0], [0], [1], [0, 0, 1, 1], [], []>} : vector<48x32xbf16>, vector<32x16xbf16>, vector<48x16xf32> -> vector<48x16xf32>
    %c13 = arith.constant 13 : index
    %c0_45 = arith.constant 0 : index
    %80 = vector.load %arg4[%c13, %c0_45] : memref<16x128xf32, #tpu.memory_space<vmem>>, vector<1x16xf32>
    %81 = vector.broadcast %80 : vector<1x16xf32> to vector<48x16xf32>
    %82 = arith.addf %79, %81 : vector<48x16xf32>
    %83 = arith.truncf %77 : vector<48x16xf32> to vector<48x16xbf16>
    %84 = arith.truncf %78 : vector<48x16xf32> to vector<48x16xbf16>
    %cst_46 = arith.constant dense<0.000000e+00> : vector<48x48xf32>
    %85 = tpu.matmul %83, %84, %cst_46 {dimension_numbers = #tpu.dot_dimension_numbers<[1], [1], [0], [0], [0, 0, 1, 0], [], []>} : vector<48x16xbf16>, vector<48x16xbf16>, vector<48x48xf32> -> vector<48x48xf32>
    %86 = arith.addf %85, %31 : vector<48x48xf32>
    %cst_47 = arith.constant dense<0xFF800000> : vector<48xf32>
    %87 = vector.multi_reduction <maximumf>, %86, %cst_47 [1] : vector<48x48xf32> to vector<48xf32>
    %88 = vector.shape_cast %87 : vector<48xf32> to vector<48x1xf32>
    %89 = vector.broadcast %88 : vector<48x1xf32> to vector<48x48xf32>
    %90 = arith.subf %86, %89 : vector<48x48xf32>
    %91 = math.exp %90 : vector<48x48xf32>
    %cst_48 = arith.constant dense<0.000000e+00> : vector<48xf32>
    %92 = vector.multi_reduction <add>, %91, %cst_48 [1] : vector<48x48xf32> to vector<48xf32>
    %93 = vector.shape_cast %92 : vector<48xf32> to vector<48x1xf32>
    %94 = arith.truncf %91 : vector<48x48xf32> to vector<48x48xbf16>
    %95 = arith.truncf %82 : vector<48x16xf32> to vector<48x16xbf16>
    %cst_49 = arith.constant dense<0.000000e+00> : vector<48x16xf32>
    %96 = tpu.matmul %94, %95, %cst_49 {dimension_numbers = #tpu.dot_dimension_numbers<[1], [0], [0], [1], [0, 0, 1, 1], [], []>} : vector<48x48xbf16>, vector<48x16xbf16>, vector<48x16xf32> -> vector<48x16xf32>
    %97 = tpu.reciprocal %93 {approx = true} : vector<48x1xf32> -> vector<48x1xf32>
    %98 = vector.broadcast %97 : vector<48x1xf32> to vector<48x16xf32>
    %99 = arith.mulf %96, %98 : vector<48x16xf32>
    %c16 = arith.constant 16 : index
    %c0_50 = arith.constant 0 : index
    %100 = vector.load %arg7[%c16, %c0_50] : memref<32x32xbf16, #tpu.memory_space<vmem>>, vector<16x32xbf16>
    %101 = arith.truncf %99 : vector<48x16xf32> to vector<48x16xbf16>
    %cst_51 = arith.constant dense<0.000000e+00> : vector<48x32xf32>
    %102 = tpu.matmul %101, %100, %cst_51 {dimension_numbers = #tpu.dot_dimension_numbers<[1], [0], [0], [1], [0, 0, 1, 1], [], []>} : vector<48x16xbf16>, vector<16x32xbf16>, vector<48x32xf32> -> vector<48x32xf32>
    %103 = arith.addf %67, %102 : vector<48x32xf32>
    %c6 = arith.constant 6 : index
    %c0_52 = arith.constant 0 : index
    %104 = vector.load %arg4[%c6, %c0_52] : memref<16x128xf32, #tpu.memory_space<vmem>>, vector<1x32xf32>
    %105 = vector.broadcast %104 : vector<1x32xf32> to vector<48x32xf32>
    %106 = arith.addf %103, %105 : vector<48x32xf32>
    %cst_53 = arith.constant dense<0.000000e+00> : vector<48xf32>
    %107 = vector.multi_reduction <add>, %106, %cst_53 [1] : vector<48x32xf32> to vector<48xf32>
    %108 = vector.shape_cast %107 : vector<48xf32> to vector<48x1xf32>
    %cst_54 = arith.constant 3.200000e+01 : f32
    %109 = vector.broadcast %cst_54 : f32 to vector<48x1xf32>
    %110 = arith.divf %108, %109 : vector<48x1xf32>
    %111 = arith.mulf %106, %106 : vector<48x32xf32>
    %cst_55 = arith.constant dense<0.000000e+00> : vector<48xf32>
    %112 = vector.multi_reduction <add>, %111, %cst_55 [1] : vector<48x32xf32> to vector<48xf32>
    %113 = vector.shape_cast %112 : vector<48xf32> to vector<48x1xf32>
    %cst_56 = arith.constant 3.200000e+01 : f32
    %114 = vector.broadcast %cst_56 : f32 to vector<48x1xf32>
    %115 = arith.divf %113, %114 : vector<48x1xf32>
    %116 = arith.mulf %110, %110 : vector<48x1xf32>
    %117 = arith.subf %115, %116 : vector<48x1xf32>
    %118 = vector.broadcast %110 : vector<48x1xf32> to vector<48x32xf32>
    %119 = arith.subf %106, %118 : vector<48x32xf32>
    %cst_57 = arith.constant 9.99999974E-6 : f32
    %120 = vector.broadcast %cst_57 : f32 to vector<48x1xf32>
    %121 = arith.addf %117, %120 : vector<48x1xf32>
    %122 = math.rsqrt %121 : vector<48x1xf32>
    %123 = vector.broadcast %122 : vector<48x1xf32> to vector<48x32xf32>
    %124 = arith.mulf %119, %123 : vector<48x32xf32>
    %c2_58 = arith.constant 2 : index
    %c0_59 = arith.constant 0 : index
    %125 = vector.load %arg4[%c2_58, %c0_59] : memref<16x128xf32, #tpu.memory_space<vmem>>, vector<1x32xf32>
    %126 = vector.broadcast %125 : vector<1x32xf32> to vector<48x32xf32>
    %127 = arith.mulf %124, %126 : vector<48x32xf32>
    %c3_60 = arith.constant 3 : index
    %c0_61 = arith.constant 0 : index
    %128 = vector.load %arg4[%c3_60, %c0_61] : memref<16x128xf32, #tpu.memory_space<vmem>>, vector<1x32xf32>
    %129 = vector.broadcast %128 : vector<1x32xf32> to vector<48x32xf32>
    %130 = arith.addf %127, %129 : vector<48x32xf32>
    %c0_62 = arith.constant 0 : index
    %c0_63 = arith.constant 0 : index
    %131 = vector.load %arg8[%c0_62, %c0_63] : memref<32x64xbf16, #tpu.memory_space<vmem>>, vector<32x64xbf16>
    %132 = arith.truncf %130 : vector<48x32xf32> to vector<48x32xbf16>
    %cst_64 = arith.constant dense<0.000000e+00> : vector<48x64xf32>
    %133 = tpu.matmul %132, %131, %cst_64 {dimension_numbers = #tpu.dot_dimension_numbers<[1], [0], [0], [1], [0, 0, 1, 1], [], []>} : vector<48x32xbf16>, vector<32x64xbf16>, vector<48x64xf32> -> vector<48x64xf32>
    %c7 = arith.constant 7 : index
    %c0_65 = arith.constant 0 : index
    %134 = vector.load %arg4[%c7, %c0_65] : memref<16x128xf32, #tpu.memory_space<vmem>>, vector<1x64xf32>
    %135 = vector.broadcast %134 : vector<1x64xf32> to vector<48x64xf32>
    %136 = arith.addf %133, %135 : vector<48x64xf32>
    %137 = arith.mulf %136, %136 : vector<48x64xf32>
    %138 = arith.mulf %136, %137 : vector<48x64xf32>
    %cst_66 = arith.constant 4.471500e-02 : f32
    %139 = vector.broadcast %cst_66 : f32 to vector<48x64xf32>
    %140 = arith.mulf %139, %138 : vector<48x64xf32>
    %141 = arith.addf %136, %140 : vector<48x64xf32>
    %cst_67 = arith.constant 0.797884583 : f32
    %142 = vector.broadcast %cst_67 : f32 to vector<48x64xf32>
    %143 = arith.mulf %142, %141 : vector<48x64xf32>
    %144 = math.tanh %143 : vector<48x64xf32>
    %cst_68 = arith.constant 1.000000e+00 : f32
    %145 = vector.broadcast %cst_68 : f32 to vector<48x64xf32>
    %146 = arith.addf %145, %144 : vector<48x64xf32>
    %cst_69 = arith.constant 5.000000e-01 : f32
    %147 = vector.broadcast %cst_69 : f32 to vector<48x64xf32>
    %148 = arith.mulf %147, %146 : vector<48x64xf32>
    %149 = arith.mulf %136, %148 : vector<48x64xf32>
    %c0_70 = arith.constant 0 : index
    %c0_71 = arith.constant 0 : index
    %150 = vector.load %arg9[%c0_70, %c0_71] : memref<64x32xbf16, #tpu.memory_space<vmem>>, vector<64x32xbf16>
    %151 = arith.truncf %149 : vector<48x64xf32> to vector<48x64xbf16>
    %cst_72 = arith.constant dense<0.000000e+00> : vector<48x32xf32>
    %152 = tpu.matmul %151, %150, %cst_72 {dimension_numbers = #tpu.dot_dimension_numbers<[1], [0], [0], [1], [0, 0, 1, 1], [], []>} : vector<48x64xbf16>, vector<64x32xbf16>, vector<48x32xf32> -> vector<48x32xf32>
    %153 = arith.addf %106, %152 : vector<48x32xf32>
    %c8 = arith.constant 8 : index
    %c0_73 = arith.constant 0 : index
    %154 = vector.load %arg4[%c8, %c0_73] : memref<16x128xf32, #tpu.memory_space<vmem>>, vector<1x32xf32>
    %155 = vector.broadcast %154 : vector<1x32xf32> to vector<48x32xf32>
    %156 = arith.addf %153, %155 : vector<48x32xf32>
    %157 = vector.extract_strided_slice %156 {offsets = [0, 0], sizes = [1, 32], strides = [1, 1]} : vector<48x32xf32> to vector<1x32xf32>
    %158 = vector.extract_strided_slice %156 {offsets = [24, 0], sizes = [1, 32], strides = [1, 1]} : vector<48x32xf32> to vector<1x32xf32>
    %159 = tpu.concatenate %157, %158 in 0 : vector<1x32xf32>, vector<1x32xf32> -> vector<2x32xf32>
    %cst_74 = arith.constant dense<0.000000e+00> : vector<2xf32>
    %160 = vector.multi_reduction <add>, %159, %cst_74 [1] : vector<2x32xf32> to vector<2xf32>
    %161 = vector.shape_cast %160 : vector<2xf32> to vector<2x1xf32>
    %cst_75 = arith.constant 3.200000e+01 : f32
    %162 = vector.broadcast %cst_75 : f32 to vector<2x1xf32>
    %163 = arith.divf %161, %162 : vector<2x1xf32>
    %164 = arith.mulf %159, %159 : vector<2x32xf32>
    %cst_76 = arith.constant dense<0.000000e+00> : vector<2xf32>
    %165 = vector.multi_reduction <add>, %164, %cst_76 [1] : vector<2x32xf32> to vector<2xf32>
    %166 = vector.shape_cast %165 : vector<2xf32> to vector<2x1xf32>
    %cst_77 = arith.constant 3.200000e+01 : f32
    %167 = vector.broadcast %cst_77 : f32 to vector<2x1xf32>
    %168 = arith.divf %166, %167 : vector<2x1xf32>
    %169 = arith.mulf %163, %163 : vector<2x1xf32>
    %170 = arith.subf %168, %169 : vector<2x1xf32>
    %171 = vector.broadcast %163 : vector<2x1xf32> to vector<2x32xf32>
    %172 = arith.subf %159, %171 : vector<2x32xf32>
    %cst_78 = arith.constant 9.99999974E-6 : f32
    %173 = vector.broadcast %cst_78 : f32 to vector<2x1xf32>
    %174 = arith.addf %170, %173 : vector<2x1xf32>
    %175 = math.rsqrt %174 : vector<2x1xf32>
    %176 = vector.broadcast %175 : vector<2x1xf32> to vector<2x32xf32>
    %177 = arith.mulf %172, %176 : vector<2x32xf32>
    %c4_79 = arith.constant 4 : index
    %c0_80 = arith.constant 0 : index
    %178 = vector.load %arg4[%c4_79, %c0_80] : memref<16x128xf32, #tpu.memory_space<vmem>>, vector<1x32xf32>
    %179 = vector.broadcast %178 : vector<1x32xf32> to vector<2x32xf32>
    %180 = arith.mulf %177, %179 : vector<2x32xf32>
    %c5_81 = arith.constant 5 : index
    %c0_82 = arith.constant 0 : index
    %181 = vector.load %arg4[%c5_81, %c0_82] : memref<16x128xf32, #tpu.memory_space<vmem>>, vector<1x32xf32>
    %182 = vector.broadcast %181 : vector<1x32xf32> to vector<2x32xf32>
    %183 = arith.addf %180, %182 : vector<2x32xf32>
    %c0_83 = arith.constant 0 : index
    %c0_84 = arith.constant 0 : index
    %184 = vector.load %arg10[%c0_83, %c0_84] : memref<32x128xbf16, #tpu.memory_space<vmem>>, vector<32x128xbf16>
    %185 = arith.truncf %183 : vector<2x32xf32> to vector<2x32xbf16>
    %cst_85 = arith.constant dense<0.000000e+00> : vector<2x128xf32>
    %186 = tpu.matmul %185, %184, %cst_85 {dimension_numbers = #tpu.dot_dimension_numbers<[1], [0], [0], [1], [0, 0, 1, 1], [], []>} : vector<2x32xbf16>, vector<32x128xbf16>, vector<2x128xf32> -> vector<2x128xf32>
    %c9 = arith.constant 9 : index
    %c0_86 = arith.constant 0 : index
    %187 = vector.load %arg4[%c9, %c0_86] : memref<16x128xf32, #tpu.memory_space<vmem>>, vector<1x128xf32>
    %188 = vector.broadcast %187 : vector<1x128xf32> to vector<2x128xf32>
    %189 = arith.addf %186, %188 : vector<2x128xf32>
    %c0_87 = arith.constant 0 : index
    %c0_88 = arith.constant 0 : index
    %190 = vector.load %arg11[%c0_87, %c0_88] : memref<2x128xf32, #tpu.memory_space<vmem>>, vector<2x128xf32>
    tpu.vector_store %arg11[%c0_87, %c0_88], %189 {strides = array<i32>} : memref<2x128xf32, #tpu.memory_space<vmem>>, vector<2x128xf32>,
    return
  }
  func.func @transform_0(%arg0: i32) -> (i32, i32) {
    %c0_i32 = arith.constant 0 : i32
    %c0_i32_0 = arith.constant 0 : i32
    %c0_i32_1 = arith.constant 0 : i32
    return %c0_i32, %c0_i32_0 : i32, i32
  }
  func.func @transform_1(%arg0: i32) -> (i32, i32) {
    %c0_i32 = arith.constant 0 : i32
    %c0_i32_0 = arith.constant 0 : i32
    %c0_i32_1 = arith.constant 0 : i32
    return %c0_i32, %c0_i32_0 : i32, i32
  }
  func.func @transform_2(%arg0: i32) -> (i32, i32) {
    %c0_i32 = arith.constant 0 : i32
    %c0_i32_0 = arith.constant 0 : i32
    %c0_i32_1 = arith.constant 0 : i32
    return %c0_i32, %c0_i32_0 : i32, i32
  }
  func.func @transform_3(%arg0: i32) -> (i32, i32) {
    %c0_i32 = arith.constant 0 : i32
    %c0_i32_0 = arith.constant 0 : i32
    %c0_i32_1 = arith.constant 0 : i32
    return %c0_i32, %c0_i32_0 : i32, i32
  }
  func.func @transform_4(%arg0: i32) -> (i32, i32) {
    %c0_i32 = arith.constant 0 : i32
    %c0_i32_0 = arith.constant 0 : i32
    %c0_i32_1 = arith.constant 0 : i32
    return %c0_i32, %c0_i32_0 : i32, i32
  }
  func.func @transform_5(%arg0: i32) -> (i32, i32, i32) {
    %c0_i32 = arith.constant 0 : i32
    %c0_i32_0 = arith.constant 0 : i32
    %c0_i32_1 = arith.constant 0 : i32
    %c0_i32_2 = arith.constant 0 : i32
    return %c0_i32, %c0_i32_0, %c0_i32_1 : i32, i32, i32
  }
  func.func @transform_6(%arg0: i32) -> (i32, i32) {
    %c0_i32 = arith.constant 0 : i32
    %c0_i32_0 = arith.constant 0 : i32
    %c0_i32_1 = arith.constant 0 : i32
    return %c0_i32, %c0_i32_0 : i32, i32
  }
  func.func @transform_7(%arg0: i32) -> (i32, i32) {
    %c0_i32 = arith.constant 0 : i32
    %c0_i32_0 = arith.constant 0 : i32
    %c0_i32_1 = arith.constant 0 : i32
    return %c0_i32, %c0_i32_0 : i32, i32
  }
  func.func @transform_8(%arg0: i32) -> (i32, i32) {
    %c0_i32 = arith.constant 0 : i32
    %c0_i32_0 = arith.constant 0 : i32
    %c0_i32_1 = arith.constant 0 : i32
    return %c0_i32, %c0_i32_0 : i32, i32
  }
  func.func @transform_9(%arg0: i32) -> (i32, i32) {
    %c0_i32 = arith.constant 0 : i32
    %c0_i32_0 = arith.constant 0 : i32
    %c0_i32_1 = arith.constant 0 : i32
    return %c0_i32, %c0_i32_0 : i32, i32
  }
  func.func @transform_10(%arg0: i32) -> (i32, i32) {
    %c0_i32 = arith.constant 0 : i32
    %c0_i32_0 = arith.constant 0 : i32
    %c0_i32_1 = arith.constant 0 : i32
    return %c0_i32, %c0_i32_0 : i32, i32
  }
}

</mosaic_0001>

<llo_original>
// kernel: model_vit_forward.1
$region0: #{model_vit_forward.1}
  #allocation0 [shape = 'u32[]', space=smem, size = 0x4, offset = 0x4, fixed_abs, tag = 'smem constant byte address 0x4 - core index']
  #allocation1 [shape = 'u32[72,128]{1,0:T(1,128)}', space=vmem, size = 0x9000, scoped, tag = 'internal scratch']
  %s0 = inlined_call_operand.vmem [shape: f32[48,64], index: 0, kind: input, shape index: {}]
  %s1 = inlined_call_operand.vmem [shape: f32[48,32], index: 1, kind: input, shape index: {}]
  %s2 = inlined_call_operand.vmem [shape: f32[48,48], index: 2, kind: input, shape index: {}]
  %s3 = inlined_call_operand.vmem [shape: f32[16,128], index: 3, kind: input, shape index: {}]
  %s4 = inlined_call_operand.vmem [shape: bf16[64,32], index: 4, kind: input, shape index: {}]
  %s5 = inlined_call_operand.vmem [shape: bf16[6,32,16], index: 5, kind: input, shape index: {}]
  %s6 = inlined_call_operand.vmem [shape: bf16[32,32], index: 6, kind: input, shape index: {}]
  %s7 = inlined_call_operand.vmem [shape: bf16[32,64], index: 7, kind: input, shape index: {}]
  %s8 = inlined_call_operand.vmem [shape: bf16[64,32], index: 8, kind: input, shape index: {}]
  %s9 = inlined_call_operand.vmem [shape: bf16[32,128], index: 9, kind: input, shape index: {}]
  %s10 = inlined_call_operand.hbm [shape: f32[2,128], index: 10, kind: output, shape index: {}]
  %s11 = sld [smem:[#allocation0]]
  $region50: #{model_vit_forward.1} parent=0
    _
  %s13 = ssub.s32 1, %s11
  %s14 = scalar_select 0, %s13, %s11
  $region1: #{model_vit_forward.1} parent=0
    #allocation2 [shape = 'u8[1024]{0}', space=vmem, size = 0x400, scoped, tag = 'output window, operand 0, single buffered']
    #allocation3 [shape = 's32[1]{0}', space=sflag, size = 0x4, scoped, tag = 'scoped memory for model_vit_forward.1']
    %15 = vsyncpa [#allocation3], 0
    // Predicated region
    $region2: #{model_vit_forward.1} parent=1 // pred_check
      _
    $region3: #{model_vit_forward.1} parent=1 // pred_check_branch
      %17 = sbr.rel (0) target = $region5
    $region4: #{model_vit_forward.1} parent=1 // pred_region
      _
    $region5: #{model_vit_forward.1} parent=1 // pred_fallthru
      _
    // Predicated region
    $region6: #{model_vit_forward.1} parent=1 // pred_check
      _
    $region7: #{model_vit_forward.1} parent=1 // pred_check_branch
      %19 = sbr.rel (0) target = $region9
    $region8: #{model_vit_forward.1} parent=1 // pred_region
      _
    $region9: #{model_vit_forward.1} parent=1 // pred_fallthru
      _
    // Predicated region
    $region10: #{model_vit_forward.1} parent=1 // pred_check
      _
    $region11: #{model_vit_forward.1} parent=1 // pred_check_branch
      %21 = sbr.rel (0) target = $region13
    $region12: #{model_vit_forward.1} parent=1 // pred_region
      _
    $region13: #{model_vit_forward.1} parent=1 // pred_fallthru
      _
    // Predicated region
    $region14: #{model_vit_forward.1} parent=1 // pred_check
      _
    $region15: #{model_vit_forward.1} parent=1 // pred_check_branch
      %23 = sbr.rel (0) target = $region17
    $region16: #{model_vit_forward.1} parent=1 // pred_region
      _
    $region17: #{model_vit_forward.1} parent=1 // pred_fallthru
      _
    // Predicated region
    $region18: #{model_vit_forward.1} parent=1 // pred_check
      _
    $region19: #{model_vit_forward.1} parent=1 // pred_check_branch
      %25 = sbr.rel (0) target = $region21
    $region20: #{model_vit_forward.1} parent=1 // pred_region
      _
    $region21: #{model_vit_forward.1} parent=1 // pred_fallthru
      _
    // Predicated region
    $region22: #{model_vit_forward.1} parent=1 // pred_check
      _
    $region23: #{model_vit_forward.1} parent=1 // pred_check_branch
      %27 = sbr.rel (0) target = $region25
    $region24: #{model_vit_forward.1} parent=1 // pred_region
      _
    $region25: #{model_vit_forward.1} parent=1 // pred_fallthru
      _
    // Predicated region
    $region26: #{model_vit_forward.1} parent=1 // pred_check
      _
    $region27: #{model_vit_forward.1} parent=1 // pred_check_branch
      %29 = sbr.rel (0) target = $region29
    $region28: #{model_vit_forward.1} parent=1 // pred_region
      _
    $region29: #{model_vit_forward.1} parent=1 // pred_fallthru
      _
    // Predicated region
    $region30: #{model_vit_forward.1} parent=1 // pred_check
      _
    $region31: #{model_vit_forward.1} parent=1 // pred_check_branch
      %31 = sbr.rel (0) target = $region33
    $region32: #{model_vit_forward.1} parent=1 // pred_region
      _
    $region33: #{model_vit_forward.1} parent=1 // pred_fallthru
      _
    // Predicated region
    $region34: #{model_vit_forward.1} parent=1 // pred_check
      _
    $region35: #{model_vit_forward.1} parent=1 // pred_check_branch
      %33 = sbr.rel (0) target = $region37
    $region36: #{model_vit_forward.1} parent=1 // pred_region
      _
    $region37: #{model_vit_forward.1} parent=1 // pred_fallthru
      _
    // Predicated region
    $region38: #{model_vit_forward.1} parent=1 // pred_check
      _
    $region39: #{model_vit_forward.1} parent=1 // pred_check_branch
      %35 = sbr.rel (0) target = $region41
    $region40: #{model_vit_forward.1} parent=1 // pred_region
      _
    $region41: #{model_vit_forward.1} parent=1 // pred_fallthru
      _
    %v37 = vld [vmem:[%s0] sm:$0xff]
    %v38 = vld [vmem:[%s0 + $0x8] sm:$0xff]
    %v39 = vld [vmem:[%s0 + $0x10] sm:$0xff]
    %v40 = vld [vmem:[%s0 + $0x18] sm:$0xff]
    %v41 = vld [vmem:[%s0 + $0x20] sm:$0xff]
    %v42 = vld [vmem:[%s0 + $0x28] sm:$0xff]
    %v43 = vld [vmem:[%s4] sm:$0xf]
    %v44 = vld [vmem:[%s4 + $0x4] sm:$0xf]
    %v45 = vld [vmem:[%s4 + $0x8] sm:$0xf]
    %v46 = vld [vmem:[%s4 + $0xc] sm:$0xf]
    %v47 = vld [vmem:[%s4 + $0x10] sm:$0xf]
    %v48 = vld [vmem:[%s4 + $0x14] sm:$0xf]
    %v49 = vld [vmem:[%s4 + $0x18] sm:$0xf]
    %v50 = vld [vmem:[%s4 + $0x1c] sm:$0xf]
    %v51 = vpack.c.bf16 %v38, %v37
    %v52 = vpack.c.bf16 %v40, %v39
    %v53 = vpack.c.bf16 %v42, %v41
    %v54 = vld [vmem:[%s1] sm:$0xff]
    %v55 = vld [vmem:[%s1 + $0x8] sm:$0xff]
    %v56 = vld [vmem:[%s1 + $0x10] sm:$0xff]
    %v57 = vld [vmem:[%s1 + $0x18] sm:$0xff]
    %v58 = vld [vmem:[%s1 + $0x20] sm:$0xff]
    %v59 = vld [vmem:[%s1 + $0x28] sm:$0xff]
    %v68 = vunpack.c.l.b16 %v43
    %v69 = vunpack.c.l.b16 %v44
    %v70 = vunpack.c.l.b16 %v45
    %v71 = vunpack.c.l.b16 %v46
    %v72 = vunpack.c.l.b16 %v47
    %v73 = vunpack.c.l.b16 %v48
    %v74 = vunpack.c.l.b16 %v49
    %v75 = vunpack.c.l.b16 %v50
    %v76 = vpack.c.b16 %v69, %v68
    %v77 = vpack.c.b16 %v71, %v70
    %v78 = vpack.c.b16 %v73, %v72
    %v79 = vpack.c.b16 %v75, %v74
    %vm84 = vcmask 523264
    %v86 = vsel %vm84, %v51, 0
    %v89 = vsel %vm84, %v52, 0
    %v92 = vsel %vm84, %v53, 0
    %94 = vmatpush.bf16.msra.mxu0 0
    %95 = vmatpush.bf16.msra.mxu0 0
    %96 = vmatpush.bf16.msra.mxu0 0
    %97 = vmatpush.bf16.msra.mxu0 0
    %98 = vmatpush.bf16.msra.mxu0 %v79
    %99 = vmatpush.bf16.msra.mxu0 %v78
    %100 = vmatpush.bf16.msra.mxu0 %v77
    %101 = vmatpush.bf16.msra.mxu0 %v76
    %102 = vmatmul.bf16.gmra.mxu0 %v86
    %v103 = vpop.f32.mrf.mxu0
    %v104 = vadd.f32 %v54, %v103
    %v105 = vpop.f32.mrf.mxu0
    %v106 = vadd.f32 %v55, %v105
    %107 = vmatmul.bf16.gmra.mxu0 %v89
    %v108 = vpop.f32.mrf.mxu0
    %v109 = vadd.f32 %v56, %v108
    %v110 = vpop.f32.mrf.mxu0
    %v111 = vadd.f32 %v57, %v110
    %112 = vmatmul.bf16.gmra.mxu0 %v92
    %v113 = vpop.f32.mrf.mxu0
    %v114 = vadd.f32 %v58, %v113
    %v115 = vpop.f32.mrf.mxu0
    %v116 = vadd.f32 %v59, %v115
    %117 = vdwg.mxu0
    %vm118 = vcmask 261120
    %v119 = vsel %vm118, %v104, 0.0
    %120 = vadd.xlane.f32.xlu0 %v119
    %v121 = vpop.xlane.xlu0 %120
    %v122 = vsel %vm118, %v106, 0.0
    %123 = vadd.xlane.f32.xlu0 %v122
    %v124 = vpop.xlane.xlu0 %123
    %v125 = vsel %vm118, %v109, 0.0
    %126 = vadd.xlane.f32.xlu0 %v125
    %v127 = vpop.xlane.xlu0 %126
    %v128 = vsel %vm118, %v111, 0.0
    %129 = vadd.xlane.f32.xlu0 %v128
    %v130 = vpop.xlane.xlu0 %129
    %v131 = vsel %vm118, %v114, 0.0
    %132 = vadd.xlane.f32.xlu0 %v131
    %v133 = vpop.xlane.xlu0 %132
    %v134 = vsel %vm118, %v116, 0.0
    %135 = vadd.xlane.f32.xlu0 %v134
    %v136 = vpop.xlane.xlu0 %135
    %v137 = vrcp.pop 32.0
    %v138 = vmul.f32 32.0, %v137
    %v139 = vsub.f32 1.0, %v138
    %v140 = vmul.f32 %v137, %v139
    %v141 = vadd.f32 %v137, %v140
    %vm142 = vweird.f32 %v137
    %v143 = vsel %vm142, %v137, %v141
    %v144 = vmul.f32 %v121, %v143
    %v145 = vmul.f32 %v124, %v143
    %v146 = vmul.f32 %v127, %v143
    %v147 = vmul.f32 %v130, %v143
    %v148 = vmul.f32 %v133, %v143
    %v149 = vmul.f32 %v136, %v143
    %v150 = vmul.f32 %v104, %v104
    %v151 = vmul.f32 %v106, %v106
    %v152 = vmul.f32 %v109, %v109
    %v153 = vmul.f32 %v111, %v111
    %v154 = vmul.f32 %v114, %v114
    %v155 = vmul.f32 %v116, %v116
    %v156 = vsel %vm118, %v150, 0.0
    %157 = vadd.xlane.f32.xlu0 %v156
    %v158 = vpop.xlane.xlu0 %157
    %v159 = vsel %vm118, %v151, 0.0
    %160 = vadd.xlane.f32.xlu0 %v159
    %v161 = vpop.xlane.xlu0 %160
    %v162 = vsel %vm118, %v152, 0.0
    %163 = vadd.xlane.f32.xlu0 %v162
    %v164 = vpop.xlane.xlu0 %163
    %v165 = vsel %vm118, %v153, 0.0
    %166 = vadd.xlane.f32.xlu0 %v165
    %v167 = vpop.xlane.xlu0 %166
    %v168 = vsel %vm118, %v154, 0.0
    %169 = vadd.xlane.f32.xlu0 %v168
    %v170 = vpop.xlane.xlu0 %169
    %v171 = vsel %vm118, %v155, 0.0
    %172 = vadd.xlane.f32.xlu0 %v171
    %v173 = vpop.xlane.xlu0 %172
    %v174 = vmul.f32 %v158, %v143
    %v175 = vmul.f32 %v161, %v143
    %v176 = vmul.f32 %v164, %v143
    %v177 = vmul.f32 %v167, %v143
    %v178 = vmul.f32 %v170, %v143
    %v179 = vmul.f32 %v173, %v143
    %v180 = vmul.f32 %v144, %v144
    %v181 = vmul.f32 %v145, %v145
    %v182 = vmul.f32 %v146, %v146
    %v183 = vmul.f32 %v147, %v147
    %v184 = vmul.f32 %v148, %v148
    %v185 = vmul.f32 %v149, %v149
    %v186 = vsub.f32 %v174, %v180
    %v187 = vsub.f32 %v175, %v181
    %v188 = vsub.f32 %v176, %v182
    %v189 = vsub.f32 %v177, %v183
    %v190 = vsub.f32 %v178, %v184
    %v191 = vsub.f32 %v179, %v185
    %v192 = vsub.f32 %v104, %v144
    %v193 = vsub.f32 %v106, %v145
    %v194 = vsub.f32 %v109, %v146
    %v195 = vsub.f32 %v111, %v147
    %v196 = vsub.f32 %v114, %v148
    %v197 = vsub.f32 %v116, %v149
    %v198 = vadd.f32 %v186, 1e-05
    %v199 = vadd.f32 %v187, 1e-05
    %v200 = vadd.f32 %v188, 1e-05
    %v201 = vadd.f32 %v189, 1e-05
    %v202 = vadd.f32 %v190, 1e-05
    %v203 = vadd.f32 %v191, 1e-05
    %v204 = vrsqrt.pop %v198
    %v205 = vmul.f32 %v204, %v198
    %v206 = vmul.f32 %v205, %v204
    %v207 = vmul.f32 0.5, %v206
    %v208 = vsub.f32 1.5, %v207
    %v209 = vmul.f32 %v204, %v208
    %vm210 = vweird.f32 %v198
    %vm211 = vweird.f32 %v204
    %vm212 = vmor %vm210, %vm211
    %v213 = vsel %vm212, %v204, %v209
    %v214 = vrsqrt.pop %v199
    %v215 = vmul.f32 %v214, %v199
    %v216 = vmul.f32 %v215, %v214
    %v217 = vmul.f32 0.5, %v216
    %v218 = vsub.f32 1.5, %v217
    %v219 = vmul.f32 %v214, %v218
    %vm220 = vweird.f32 %v199
    %vm221 = vweird.f32 %v214
    %vm222 = vmor %vm220, %vm221
    %v223 = vsel %vm222, %v214, %v219
    %v224 = vrsqrt.pop %v200
    %v225 = vmul.f32 %v224, %v200
    %v226 = vmul.f32 %v225, %v224
    %v227 = vmul.f32 0.5, %v226
    %v228 = vsub.f32 1.5, %v227
    %v229 = vmul.f32 %v224, %v228
    %vm230 = vweird.f32 %v200
    %vm231 = vweird.f32 %v224
    %vm232 = vmor %vm230, %vm231
    %v233 = vsel %vm232, %v224, %v229
    %v234 = vrsqrt.pop %v201
    %v235 = vmul.f32 %v234, %v201
    %v236 = vmul.f32 %v235, %v234
    %v237 = vmul.f32 0.5, %v236
    %v238 = vsub.f32 1.5, %v237
    %v239 = vmul.f32 %v234, %v238
    %vm240 = vweird.f32 %v201
    %vm241 = vweird.f32 %v234
    %vm242 = vmor %vm240, %vm241
    %v243 = vsel %vm242, %v234, %v239
    %v244 = vrsqrt.pop %v202
    %v245 = vmul.f32 %v244, %v202
    %v246 = vmul.f32 %v245, %v244
    %v247 = vmul.f32 0.5, %v246
    %v248 = vsub.f32 1.5, %v247
    %v249 = vmul.f32 %v244, %v248
    %vm250 = vweird.f32 %v202
    %vm251 = vweird.f32 %v244
    %vm252 = vmor %vm250, %vm251
    %v253 = vsel %vm252, %v244, %v249
    %v254 = vrsqrt.pop %v203
    %v255 = vmul.f32 %v254, %v203
    %v256 = vmul.f32 %v255, %v254
    %v257 = vmul.f32 0.5, %v256
    %v258 = vsub.f32 1.5, %v257
    %v259 = vmul.f32 %v254, %v258
    %vm260 = vweird.f32 %v203
    %vm261 = vweird.f32 %v254
    %vm262 = vmor %vm260, %vm261
    %v263 = vsel %vm262, %v254, %v259
    %v264 = vmul.f32 %v192, %v213
    %v265 = vmul.f32 %v193, %v223
    %v266 = vmul.f32 %v194, %v233
    %v267 = vmul.f32 %v195, %v243
    %v268 = vmul.f32 %v196, %v253
    %v269 = vmul.f32 %v197, %v263
    %v270 = vld [vmem:[%s3] sm:$0x1]
    %v271 = vperm.slane %v270, 0
    %v272 = vmul.f32 %v264, %v271
    %v273 = vmul.f32 %v265, %v271
    %v274 = vmul.f32 %v266, %v271
    %v275 = vmul.f32 %v267, %v271
    %v276 = vmul.f32 %v268, %v271
    %v277 = vmul.f32 %v269, %v271
    %v278 = vld [vmem:[%s3 + $0x1] sm:$0x1]
    %v279 = vperm.slane %v278, 0
    %v280 = vadd.f32 %v272, %v279
    %v281 = vadd.f32 %v273, %v279
    %v282 = vadd.f32 %v274, %v279
    %v283 = vadd.f32 %v275, %v279
    %v284 = vadd.f32 %v276, %v279
    %v285 = vadd.f32 %v277, %v279
    %v286 = vpack.c.bf16 %v281, %v280
    %v287 = vpack.c.bf16 %v283, %v282
    %v288 = vpack.c.bf16 %v285, %v284
    %v289 = vld [vmem:[%s2] sm:$0xff]
    %v290 = vld [vmem:[%s2 + $0x8] sm:$0xff]
    %v291 = vld [vmem:[%s2 + $0x10] sm:$0xff]
    %v292 = vld [vmem:[%s2 + $0x18] sm:$0xff]
    %v293 = vld [vmem:[%s2 + $0x20] sm:$0xff]
    %v294 = vld [vmem:[%s2 + $0x28] sm:$0xff]
    %v295 = vld [vmem:[%s5] sm:$0xf]
    %v296 = vld [vmem:[%s5 + $0x4] sm:$0xf]
    %v297 = vld [vmem:[%s5 + $0x8] sm:$0xf]
    %v298 = vld [vmem:[%s5 + $0xc] sm:$0xf]
    %s299 = scalar_lea.vmem %s5, 16
    %v300 = vld [vmem:[%s299] sm:$0xf]
    %v301 = vld [vmem:[%s299 + $0x4] sm:$0xf]
    %v302 = vld [vmem:[%s299 + $0x8] sm:$0xf]
    %v303 = vld [vmem:[%s299 + $0xc] sm:$0xf]
    %s304 = scalar_lea.vmem %s5, 32
    %v305 = vld [vmem:[%s304] sm:$0xf]
    %v306 = vld [vmem:[%s304 + $0x4] sm:$0xf]
    %v307 = vld [vmem:[%s304 + $0x8] sm:$0xf]
    %v308 = vld [vmem:[%s304 + $0xc] sm:$0xf]
    %v309 = vld [vmem:[%s3 + $0xa] sm:$0x1]
    %v310 = vperm.slane %v309, 0
    %v315 = vunpack.c.l.b16 %v295
    %v316 = vunpack.c.l.b16 %v296
    %v317 = vunpack.c.l.b16 %v297
    %v318 = vunpack.c.l.b16 %v298
    %v319 = vpack.c.b16 %v316, %v315
    %v320 = vpack.c.b16 %v318, %v317
    %v324 = vsel %vm118, %v286, 0
    %v327 = vsel %vm118, %v287, 0
    %v330 = vsel %vm118, %v288, 0
    %332 = vmatpush.bf16.msra.mxu0 0
    %333 = vmatpush.bf16.msra.mxu0 0
    %334 = vmatpush.bf16.msra.mxu0 0
    %335 = vmatpush.bf16.msra.mxu0 0
    %336 = vmatpush.bf16.msra.mxu0 0
    %337 = vmatpush.bf16.msra.mxu0 0
    %338 = vmatpush.bf16.msra.mxu0 %v320
    %339 = vmatpush.bf16.msra.mxu0 %v319
    %340 = vmatmul.bf16.gmra.mxu0 %v324
    %v341 = vpop.f32.mrf.mxu0
    %v342 = vadd.f32 %v310, %v341
    %v343 = vpop.f32.mrf.mxu0
    %v344 = vadd.f32 %v310, %v343
    %345 = vmatmul.bf16.gmra.mxu0 %v327
    %v346 = vpop.f32.mrf.mxu0
    %v347 = vadd.f32 %v310, %v346
    %v348 = vpop.f32.mrf.mxu0
    %v349 = vadd.f32 %v310, %v348
    %350 = vmatmul.bf16.gmra.mxu0 %v330
    %v351 = vpop.f32.mrf.mxu0
    %v352 = vadd.f32 %v310, %v351
    %v353 = vpop.f32.mrf.mxu0
    %v354 = vadd.f32 %v310, %v353
    %355 = vdwg.mxu0
    %v360 = vunpack.c.l.b16 %v300
    %v361 = vunpack.c.l.b16 %v301
    %v362 = vunpack.c.l.b16 %v302
    %v363 = vunpack.c.l.b16 %v303
    %v364 = vpack.c.b16 %v361, %v360
    %v365 = vpack.c.b16 %v363, %v362
    %368 = vmatpush.bf16.msra.mxu0 0
    %369 = vmatpush.bf16.msra.mxu0 0
    %370 = vmatpush.bf16.msra.mxu0 0
    %371 = vmatpush.bf16.msra.mxu0 0
    %372 = vmatpush.bf16.msra.mxu0 0
    %373 = vmatpush.bf16.msra.mxu0 0
    %374 = vmatpush.bf16.msra.mxu0 %v365
    %375 = vmatpush.bf16.msra.mxu0 %v364
    %376 = vmatmul.bf16.gmra.mxu0 %v324
    %v377 = vpop.f32.mrf.mxu0
    %v378 = vadd.f32 0.0, %v377
    %v379 = vpop.f32.mrf.mxu0
    %v380 = vadd.f32 0.0, %v379
    %381 = vmatmul.bf16.gmra.mxu0 %v327
    %v382 = vpop.f32.mrf.mxu0
    %v383 = vadd.f32 0.0, %v382
    %v384 = vpop.f32.mrf.mxu0
    %v385 = vadd.f32 0.0, %v384
    %386 = vmatmul.bf16.gmra.mxu0 %v330
    %v387 = vpop.f32.mrf.mxu0
    %v388 = vadd.f32 0.0, %v387
    %v389 = vpop.f32.mrf.mxu0
    %v390 = vadd.f32 0.0, %v389
    %391 = vdwg.mxu0
    %v392 = vld [vmem:[%s3 + $0xc] sm:$0x1]
    %v393 = vperm.slane %v392, 0
    %v398 = vunpack.c.l.b16 %v305
    %v399 = vunpack.c.l.b16 %v306
    %v400 = vunpack.c.l.b16 %v307
    %v401 = vunpack.c.l.b16 %v308
    %v402 = vpack.c.b16 %v399, %v398
    %v403 = vpack.c.b16 %v401, %v400
    %406 = vmatpush.bf16.msra.mxu0 0
    %407 = vmatpush.bf16.msra.mxu0 0
    %408 = vmatpush.bf16.msra.mxu0 0
    %409 = vmatpush.bf16.msra.mxu0 0
    %410 = vmatpush.bf16.msra.mxu0 0
    %411 = vmatpush.bf16.msra.mxu0 0
    %412 = vmatpush.bf16.msra.mxu0 %v403
    %413 = vmatpush.bf16.msra.mxu0 %v402
    %414 = vmatmul.bf16.gmra.mxu0 %v324
    %v415 = vpop.f32.mrf.mxu0
    %v416 = vadd.f32 %v393, %v415
    %v417 = vpop.f32.mrf.mxu0
    %v418 = vadd.f32 %v393, %v417
    %419 = vmatmul.bf16.gmra.mxu0 %v327
    %v420 = vpop.f32.mrf.mxu0
    %v421 = vadd.f32 %v393, %v420
    %v422 = vpop.f32.mrf.mxu0
    %v423 = vadd.f32 %v393, %v422
    %424 = vmatmul.bf16.gmra.mxu0 %v330
    %v425 = vpop.f32.mrf.mxu0
    %v426 = vadd.f32 %v393, %v425
    %v427 = vpop.f32.mrf.mxu0
    %v428 = vadd.f32 %v393, %v427
    %429 = vdwg.mxu0
    %v430 = vpack.c.bf16 %v344, %v342
    %v431 = vpack.c.bf16 %v349, %v347
    %v432 = vpack.c.bf16 %v354, %v352
    %v433 = vpack.c.bf16 %v380, %v378
    %v434 = vpack.c.bf16 %v385, %v383
    %v435 = vpack.c.bf16 %v390, %v388
    %vm436 = vcmask 130048
    %v438 = vsel %vm436, %v430, 0
    %v441 = vsel %vm436, %v431, 0
    %v444 = vsel %vm436, %v432, 0
    %v447 = vsel %vm436, %v433, 0
    %v450 = vsel %vm436, %v434, 0
    %v453 = vsel %vm436, %v435, 0
    %455 = vmatpush.bf16.xpose.msra.mxu0 0
    %456 = vmatpush.bf16.xpose.msra.mxu0 0
    %457 = vmatpush.bf16.xpose.msra.mxu0 0
    %458 = vmatpush.bf16.xpose.msra.mxu0 0
    %459 = vmatpush.bf16.xpose.msra.mxu0 0
    %460 = vmatpush.bf16.xpose.msra.mxu0 %v453
    %461 = vmatpush.bf16.xpose.msra.mxu0 %v450
    %462 = vmatpush.bf16.xpose.msra.mxu0 %v447
    %463 = vmatmul.bf16.gmra.mxu0 %v438
    %v464 = vpop.f32.mrf.mxu0
    %v465 = vadd.f32 %v289, %v464
    %v466 = vpop.f32.mrf.mxu0
    %v467 = vadd.f32 %v290, %v466
    %468 = vmatmul.bf16.gmra.mxu0 %v441
    %v469 = vpop.f32.mrf.mxu0
    %v470 = vadd.f32 %v291, %v469
    %v471 = vpop.f32.mrf.mxu0
    %v472 = vadd.f32 %v292, %v471
    %473 = vmatmul.bf16.gmra.mxu0 %v444
    %v474 = vpop.f32.mrf.mxu0
    %v475 = vadd.f32 %v293, %v474
    %v476 = vpop.f32.mrf.mxu0
    %v477 = vadd.f32 %v294, %v476
    %478 = vdwg.mxu0
    %vm479 = vcmask 392192
    %v480 = vsel %vm479, %v465, -inf
    %481 = vmax.xlane.f32.xlu0 %v480
    %v482 = vpop.xlane.xlu0 %481
    %v483 = vsel %vm479, %v467, -inf
    %484 = vmax.xlane.f32.xlu0 %v483
    %v485 = vpop.xlane.xlu0 %484
    %v486 = vsel %vm479, %v470, -inf
    %487 = vmax.xlane.f32.xlu0 %v486
    %v488 = vpop.xlane.xlu0 %487
    %v489 = vsel %vm479, %v472, -inf
    %490 = vmax.xlane.f32.xlu0 %v489
    %v491 = vpop.xlane.xlu0 %490
    %v492 = vsel %vm479, %v475, -inf
    %493 = vmax.xlane.f32.xlu0 %v492
    %v494 = vpop.xlane.xlu0 %493
    %v495 = vsel %vm479, %v477, -inf
    %496 = vmax.xlane.f32.xlu0 %v495
    %v497 = vpop.xlane.xlu0 %496
    %v498 = vsub.f32 %v465, %v482
    %v499 = vsub.f32 %v467, %v485
    %v500 = vsub.f32 %v470, %v488
    %v501 = vsub.f32 %v472, %v491
    %v502 = vsub.f32 %v475, %v494
    %v503 = vsub.f32 %v477, %v497
    %v504 = vmul.f32 %v498, 1.442695
    %v505 = vpow.pop %v504
    %v506 = vmul.f32 %v499, 1.442695
    %v507 = vpow.pop %v506
    %v508 = vmul.f32 %v500, 1.442695
    %v509 = vpow.pop %v508
    %v510 = vmul.f32 %v501, 1.442695
    %v511 = vpow.pop %v510
    %v512 = vmul.f32 %v502, 1.442695
    %v513 = vpow.pop %v512
    %v514 = vmul.f32 %v503, 1.442695
    %v515 = vpow.pop %v514
    %v516 = vsel %vm479, %v505, 0.0
    %517 = vadd.xlane.f32.xlu0 %v516
    %v518 = vpop.xlane.xlu0 %517
    %v519 = vsel %vm479, %v507, 0.0
    %520 = vadd.xlane.f32.xlu0 %v519
    %v521 = vpop.xlane.xlu0 %520
    %v522 = vsel %vm479, %v509, 0.0
    %523 = vadd.xlane.f32.xlu0 %v522
    %v524 = vpop.xlane.xlu0 %523
    %v525 = vsel %vm479, %v511, 0.0
    %526 = vadd.xlane.f32.xlu0 %v525
    %v527 = vpop.xlane.xlu0 %526
    %v528 = vsel %vm479, %v513, 0.0
    %529 = vadd.xlane.f32.xlu0 %v528
    %v530 = vpop.xlane.xlu0 %529
    %v531 = vsel %vm479, %v515, 0.0
    %532 = vadd.xlane.f32.xlu0 %v531
    %v533 = vpop.xlane.xlu0 %532
    %v534 = vpack.c.bf16 %v507, %v505
    %v535 = vpack.c.bf16 %v511, %v509
    %v536 = vpack.c.bf16 %v515, %v513
    %v537 = vpack.c.bf16 %v418, %v416
    %v538 = vpack.c.bf16 %v423, %v421
    %v539 = vpack.c.bf16 %v428, %v426
    %v541 = vsel %vm479, %v534, 0
    %v544 = vsel %vm479, %v535, 0
    %v547 = vsel %vm479, %v536, 0
    %549 = vmatpush.bf16.msra.mxu0 0
    %550 = vmatpush.bf16.msra.mxu0 0
    %551 = vmatpush.bf16.msra.mxu0 0
    %552 = vmatpush.bf16.msra.mxu0 0
    %553 = vmatpush.bf16.msra.mxu0 0
    %554 = vmatpush.bf16.msra.mxu0 %v539
    %555 = vmatpush.bf16.msra.mxu0 %v538
    %556 = vmatpush.bf16.msra.mxu0 %v537
    %557 = vmatmul.bf16.gmra.mxu0 %v541
    %v558 = vpop.f32.mrf.mxu0
    %v559 = vadd.f32 0.0, %v558
    %v560 = vpop.f32.mrf.mxu0
    %v561 = vadd.f32 0.0, %v560
    %562 = vmatmul.bf16.gmra.mxu0 %v544
    %v563 = vpop.f32.mrf.mxu0
    %v564 = vadd.f32 0.0, %v563
    %v565 = vpop.f32.mrf.mxu0
    %v566 = vadd.f32 0.0, %v565
    %567 = vmatmul.bf16.gmra.mxu0 %v547
    %v568 = vpop.f32.mrf.mxu0
    %v569 = vadd.f32 0.0, %v568
    %v570 = vpop.f32.mrf.mxu0
    %v571 = vadd.f32 0.0, %v570
    %572 = vdwg.mxu0
    %v573 = vrcp.pop %v518
    %v574 = vrcp.pop %v521
    %v575 = vrcp.pop %v524
    %v576 = vrcp.pop %v527
    %v577 = vrcp.pop %v530
    %v578 = vrcp.pop %v533
    %v579 = vmul.f32 %v559, %v573
    %v580 = vmul.f32 %v561, %v574
    %v581 = vmul.f32 %v564, %v575
    %v582 = vmul.f32 %v566, %v576
    %v583 = vmul.f32 %v569, %v577
    %v584 = vmul.f32 %v571, %v578
    %v585 = vld [vmem:[%s6] sm:$0xf]
    %v586 = vld [vmem:[%s6 + $0x4] sm:$0xf]
    %v587 = vpack.c.bf16 %v580, %v579
    %v588 = vpack.c.bf16 %v582, %v581
    %v589 = vpack.c.bf16 %v584, %v583
    %v592 = vunpack.c.l.b16 %v585
    %v593 = vunpack.c.l.b16 %v586
    %v594 = vpack.c.b16 %v593, %v592
    %v597 = vsel %vm436, %v587, 0
    %v600 = vsel %vm436, %v588, 0
    %v603 = vsel %vm436, %v589, 0
    %605 = vmatpush.bf16.msra.mxu0 0
    %606 = vmatpush.bf16.msra.mxu0 0
    %607 = vmatpush.bf16.msra.mxu0 0
    %608 = vmatpush.bf16.msra.mxu0 0
    %609 = vmatpush.bf16.msra.mxu0 0
    %610 = vmatpush.bf16.msra.mxu0 0
    %611 = vmatpush.bf16.msra.mxu0 0
    %612 = vmatpush.bf16.msra.mxu0 %v594
    %613 = vmatmul.bf16.gmra.mxu0 %v597
    %v614 = vpop.f32.mrf.mxu0
    %v615 = vadd.f32 0.0, %v614
    %v616 = vpop.f32.mrf.mxu0
    %v617 = vadd.f32 0.0, %v616
    %618 = vmatmul.bf16.gmra.mxu0 %v600
    %v619 = vpop.f32.mrf.mxu0
    %v620 = vadd.f32 0.0, %v619
    %v621 = vpop.f32.mrf.mxu0
    %v622 = vadd.f32 0.0, %v621
    %623 = vmatmul.bf16.gmra.mxu0 %v603
    %v624 = vpop.f32.mrf.mxu0
    %v625 = vadd.f32 0.0, %v624
    %v626 = vpop.f32.mrf.mxu0
    %v627 = vadd.f32 0.0, %v626
    %628 = vdwg.mxu0
    %v629 = vadd.f32 %v104, %v615
    %v630 = vadd.f32 %v106, %v617
    %v631 = vadd.f32 %v109, %v620
    %v632 = vadd.f32 %v111, %v622
    %v633 = vadd.f32 %v114, %v625
    %v634 = vadd.f32 %v116, %v627
    %s635 = scalar_lea.vmem %s5, 48
    %v636 = vld [vmem:[%s635] sm:$0xf]
    %v637 = vld [vmem:[%s635 + $0x4] sm:$0xf]
    %v638 = vld [vmem:[%s635 + $0x8] sm:$0xf]
    %v639 = vld [vmem:[%s635 + $0xc] sm:$0xf]
    %s640 = scalar_lea.vmem %s5, 64
    %v641 = vld [vmem:[%s640] sm:$0xf]
    %v642 = vld [vmem:[%s640 + $0x4] sm:$0xf]
    %v643 = vld [vmem:[%s640 + $0x8] sm:$0xf]
    %v644 = vld [vmem:[%s640 + $0xc] sm:$0xf]
    %s645 = scalar_lea.vmem %s5, 80
    %v646 = vld [vmem:[%s645] sm:$0xf]
    %v647 = vld [vmem:[%s645 + $0x4] sm:$0xf]
    %v648 = vld [vmem:[%s645 + $0x8] sm:$0xf]
    %v649 = vld [vmem:[%s645 + $0xc] sm:$0xf]
    %v650 = vld [vmem:[%s3 + $0xb] sm:$0x1]
    %v651 = vperm.slane %v650, 0
    %v656 = vunpack.c.l.b16 %v636
    %v657 = vunpack.c.l.b16 %v637
    %v658 = vunpack.c.l.b16 %v638
    %v659 = vunpack.c.l.b16 %v639
    %v660 = vpack.c.b16 %v657, %v656
    %v661 = vpack.c.b16 %v659, %v658
    %664 = vmatpush.bf16.msra.mxu0 0
    %665 = vmatpush.bf16.msra.mxu0 0
    %666 = vmatpush.bf16.msra.mxu0 0
    %667 = vmatpush.bf16.msra.mxu0 0
    %668 = vmatpush.bf16.msra.mxu0 0
    %669 = vmatpush.bf16.msra.mxu0 0
    %670 = vmatpush.bf16.msra.mxu0 %v661
    %671 = vmatpush.bf16.msra.mxu0 %v660
    %672 = vmatmul.bf16.gmra.mxu0 %v324
    %v673 = vpop.f32.mrf.mxu0
    %v674 = vadd.f32 %v651, %v673
    %v675 = vpop.f32.mrf.mxu0
    %v676 = vadd.f32 %v651, %v675
    %677 = vmatmul.bf16.gmra.mxu0 %v327
    %v678 = vpop.f32.mrf.mxu0
    %v679 = vadd.f32 %v651, %v678
    %v680 = vpop.f32.mrf.mxu0
    %v681 = vadd.f32 %v651, %v680
    %682 = vmatmul.bf16.gmra.mxu0 %v330
    %v683 = vpop.f32.mrf.mxu0
    %v684 = vadd.f32 %v651, %v683
    %v685 = vpop.f32.mrf.mxu0
    %v686 = vadd.f32 %v651, %v685
    %687 = vdwg.mxu0
    %v692 = vunpack.c.l.b16 %v641
    %v693 = vunpack.c.l.b16 %v642
    %v694 = vunpack.c.l.b16 %v643
    %v695 = vunpack.c.l.b16 %v644
    %v696 = vpack.c.b16 %v693, %v692
    %v697 = vpack.c.b16 %v695, %v694
    %700 = vmatpush.bf16.msra.mxu0 0
    %701 = vmatpush.bf16.msra.mxu0 0
    %702 = vmatpush.bf16.msra.mxu0 0
    %703 = vmatpush.bf16.msra.mxu0 0
    %704 = vmatpush.bf16.msra.mxu0 0
    %705 = vmatpush.bf16.msra.mxu0 0
    %706 = vmatpush.bf16.msra.mxu0 %v697
    %707 = vmatpush.bf16.msra.mxu0 %v696
    %708 = vmatmul.bf16.gmra.mxu0 %v324
    %v709 = vpop.f32.mrf.mxu0
    %v710 = vadd.f32 0.0, %v709
    %v711 = vpop.f32.mrf.mxu0
    %v712 = vadd.f32 0.0, %v711
    %713 = vmatmul.bf16.gmra.mxu0 %v327
    %v714 = vpop.f32.mrf.mxu0
    %v715 = vadd.f32 0.0, %v714
    %v716 = vpop.f32.mrf.mxu0
    %v717 = vadd.f32 0.0, %v716
    %718 = vmatmul.bf16.gmra.mxu0 %v330
    %v719 = vpop.f32.mrf.mxu0
    %v720 = vadd.f32 0.0, %v719
    %v721 = vpop.f32.mrf.mxu0
    %v722 = vadd.f32 0.0, %v721
    %723 = vdwg.mxu0
    %v724 = vld [vmem:[%s3 + $0xd] sm:$0x1]
    %v725 = vperm.slane %v724, 0
    %v730 = vunpack.c.l.b16 %v646
    %v731 = vunpack.c.l.b16 %v647
    %v732 = vunpack.c.l.b16 %v648
    %v733 = vunpack.c.l.b16 %v649
    %v734 = vpack.c.b16 %v731, %v730
    %v735 = vpack.c.b16 %v733, %v732
    %738 = vmatpush.bf16.msra.mxu0 0
    %739 = vmatpush.bf16.msra.mxu0 0
    %740 = vmatpush.bf16.msra.mxu0 0
    %741 = vmatpush.bf16.msra.mxu0 0
    %742 = vmatpush.bf16.msra.mxu0 0
    %743 = vmatpush.bf16.msra.mxu0 0
    %744 = vmatpush.bf16.msra.mxu0 %v735
    %745 = vmatpush.bf16.msra.mxu0 %v734
    %746 = vmatmul.bf16.gmra.mxu0 %v324
    %v747 = vpop.f32.mrf.mxu0
    %v748 = vadd.f32 %v725, %v747
    %v749 = vpop.f32.mrf.mxu0
    %v750 = vadd.f32 %v725, %v749
    %751 = vmatmul.bf16.gmra.mxu0 %v327
    %v752 = vpop.f32.mrf.mxu0
    %v753 = vadd.f32 %v725, %v752
    %v754 = vpop.f32.mrf.mxu0
    %v755 = vadd.f32 %v725, %v754
    %756 = vmatmul.bf16.gmra.mxu0 %v330
    %v757 = vpop.f32.mrf.mxu0
    %v758 = vadd.f32 %v725, %v757
    %v759 = vpop.f32.mrf.mxu0
    %v760 = vadd.f32 %v725, %v759
    %761 = vdwg.mxu0
    %v762 = vpack.c.bf16 %v676, %v674
    %v763 = vpack.c.bf16 %v681, %v679
    %v764 = vpack.c.bf16 %v686, %v684
    %v765 = vpack.c.bf16 %v712, %v710
    %v766 = vpack.c.bf16 %v717, %v715
    %v767 = vpack.c.bf16 %v722, %v720
    %v769 = vsel %vm436, %v762, 0
    %v772 = vsel %vm436, %v763, 0
    %v775 = vsel %vm436, %v764, 0
    %v778 = vsel %vm436, %v765, 0
    %v781 = vsel %vm436, %v766, 0
    %v784 = vsel %vm436, %v767, 0
    %786 = vmatpush.bf16.xpose.msra.mxu0 0
    %787 = vmatpush.bf16.xpose.msra.mxu0 0
    %788 = vmatpush.bf16.xpose.msra.mxu0 0
    %789 = vmatpush.bf16.xpose.msra.mxu0 0
    %790 = vmatpush.bf16.xpose.msra.mxu0 0
    %791 = vmatpush.bf16.xpose.msra.mxu0 %v784
    %792 = vmatpush.bf16.xpose.msra.mxu0 %v781
    %793 = vmatpush.bf16.xpose.msra.mxu0 %v778
    %794 = vmatmul.bf16.gmra.mxu0 %v769
    %v795 = vpop.f32.mrf.mxu0
    %v796 = vadd.f32 %v289, %v795
    %v797 = vpop.f32.mrf.mxu0
    %v798 = vadd.f32 %v290, %v797
    %799 = vmatmul.bf16.gmra.mxu0 %v772
    %v800 = vpop.f32.mrf.mxu0
    %v801 = vadd.f32 %v291, %v800
    %v802 = vpop.f32.mrf.mxu0
    %v803 = vadd.f32 %v292, %v802
    %804 = vmatmul.bf16.gmra.mxu0 %v775
    %v805 = vpop.f32.mrf.mxu0
    %v806 = vadd.f32 %v293, %v805
    %v807 = vpop.f32.mrf.mxu0
    %v808 = vadd.f32 %v294, %v807
    %809 = vdwg.mxu0
    %v810 = vsel %vm479, %v796, -inf
    %811 = vmax.xlane.f32.xlu0 %v810
    %v812 = vpop.xlane.xlu0 %811
    %v813 = vsel %vm479, %v798, -inf
    %814 = vmax.xlane.f32.xlu0 %v813
    %v815 = vpop.xlane.xlu0 %814
    %v816 = vsel %vm479, %v801, -inf
    %817 = vmax.xlane.f32.xlu0 %v816
    %v818 = vpop.xlane.xlu0 %817
    %v819 = vsel %vm479, %v803, -inf
    %820 = vmax.xlane.f32.xlu0 %v819
    %v821 = vpop.xlane.xlu0 %820
    %v822 = vsel %vm479, %v806, -inf
    %823 = vmax.xlane.f32.xlu0 %v822
    %v824 = vpop.xlane.xlu0 %823
    %v825 = vsel %vm479, %v808, -inf
    %826 = vmax.xlane.f32.xlu0 %v825
    %v827 = vpop.xlane.xlu0 %826
    %v828 = vsub.f32 %v796, %v812
    %v829 = vsub.f32 %v798, %v815
    %v830 = vsub.f32 %v801, %v818
    %v831 = vsub.f32 %v803, %v821
    %v832 = vsub.f32 %v806, %v824
    %v833 = vsub.f32 %v808, %v827
    %v834 = vmul.f32 %v828, 1.442695
    %v835 = vpow.pop %v834
    %v836 = vmul.f32 %v829, 1.442695
    %v837 = vpow.pop %v836
    %v838 = vmul.f32 %v830, 1.442695
    %v839 = vpow.pop %v838
    %v840 = vmul.f32 %v831, 1.442695
    %v841 = vpow.pop %v840
    %v842 = vmul.f32 %v832, 1.442695
    %v843 = vpow.pop %v842
    %v844 = vmul.f32 %v833, 1.442695
    %v845 = vpow.pop %v844
    %v846 = vsel %vm479, %v835, 0.0
    %847 = vadd.xlane.f32.xlu0 %v846
    %v848 = vpop.xlane.xlu0 %847
    %v849 = vsel %vm479, %v837, 0.0
    %850 = vadd.xlane.f32.xlu0 %v849
    %v851 = vpop.xlane.xlu0 %850
    %v852 = vsel %vm479, %v839, 0.0
    %853 = vadd.xlane.f32.xlu0 %v852
    %v854 = vpop.xlane.xlu0 %853
    %v855 = vsel %vm479, %v841, 0.0
    %856 = vadd.xlane.f32.xlu0 %v855
    %v857 = vpop.xlane.xlu0 %856
    %v858 = vsel %vm479, %v843, 0.0
    %859 = vadd.xlane.f32.xlu0 %v858
    %v860 = vpop.xlane.xlu0 %859
    %v861 = vsel %vm479, %v845, 0.0
    %862 = vadd.xlane.f32.xlu0 %v861
    %v863 = vpop.xlane.xlu0 %862
    %v864 = vpack.c.bf16 %v837, %v835
    %v865 = vpack.c.bf16 %v841, %v839
    %v866 = vpack.c.bf16 %v845, %v843
    %v867 = vpack.c.bf16 %v750, %v748
    %v868 = vpack.c.bf16 %v755, %v753
    %v869 = vpack.c.bf16 %v760, %v758
    %v871 = vsel %vm479, %v864, 0
    %v874 = vsel %vm479, %v865, 0
    %v877 = vsel %vm479, %v866, 0
    %879 = vmatpush.bf16.msra.mxu0 0
    %880 = vmatpush.bf16.msra.mxu0 0
    %881 = vmatpush.bf16.msra.mxu0 0
    %882 = vmatpush.bf16.msra.mxu0 0
    %883 = vmatpush.bf16.msra.mxu0 0
    %884 = vmatpush.bf16.msra.mxu0 %v869
    %885 = vmatpush.bf16.msra.mxu0 %v868
    %886 = vmatpush.bf16.msra.mxu0 %v867
    %887 = vmatmul.bf16.gmra.mxu0 %v871
    %v888 = vpop.f32.mrf.mxu0
    %v889 = vadd.f32 0.0, %v888
    %v890 = vpop.f32.mrf.mxu0
    %v891 = vadd.f32 0.0, %v890
    %892 = vmatmul.bf16.gmra.mxu0 %v874
    %v893 = vpop.f32.mrf.mxu0
    %v894 = vadd.f32 0.0, %v893
    %v895 = vpop.f32.mrf.mxu0
    %v896 = vadd.f32 0.0, %v895
    %897 = vmatmul.bf16.gmra.mxu0 %v877
    %v898 = vpop.f32.mrf.mxu0
    %v899 = vadd.f32 0.0, %v898
    %v900 = vpop.f32.mrf.mxu0
    %v901 = vadd.f32 0.0, %v900
    %902 = vdwg.mxu0
    %v903 = vrcp.pop %v848
    %v904 = vrcp.pop %v851
    %v905 = vrcp.pop %v854
    %v906 = vrcp.pop %v857
    %v907 = vrcp.pop %v860
    %v908 = vrcp.pop %v863
    %v909 = vmul.f32 %v889, %v903
    %v910 = vmul.f32 %v891, %v904
    %v911 = vmul.f32 %v894, %v905
    %v912 = vmul.f32 %v896, %v906
    %v913 = vmul.f32 %v899, %v907
    %v914 = vmul.f32 %v901, %v908
    %v915 = vld [vmem:[%s6 + $0x8] sm:$0xf]
    %v916 = vld [vmem:[%s6 + $0xc] sm:$0xf]
    %v917 = vpack.c.bf16 %v910, %v909
    %v918 = vpack.c.bf16 %v912, %v911
    %v919 = vpack.c.bf16 %v914, %v913
    %v922 = vunpack.c.l.b16 %v915
    %v923 = vunpack.c.l.b16 %v916
    %v924 = vpack.c.b16 %v923, %v922
    %v927 = vsel %vm436, %v917, 0
    %v930 = vsel %vm436, %v918, 0
    %v933 = vsel %vm436, %v919, 0
    %935 = vmatpush.bf16.msra.mxu0 0
    %936 = vmatpush.bf16.msra.mxu0 0
    %937 = vmatpush.bf16.msra.mxu0 0
    %938 = vmatpush.bf16.msra.mxu0 0
    %939 = vmatpush.bf16.msra.mxu0 0
    %940 = vmatpush.bf16.msra.mxu0 0
    %941 = vmatpush.bf16.msra.mxu0 0
    %942 = vmatpush.bf16.msra.mxu0 %v924
    %943 = vmatmul.bf16.gmra.mxu0 %v927
    %v944 = vpop.f32.mrf.mxu0
    %v945 = vadd.f32 0.0, %v944
    %v946 = vpop.f32.mrf.mxu0
    %v947 = vadd.f32 0.0, %v946
    %948 = vmatmul.bf16.gmra.mxu0 %v930
    %v949 = vpop.f32.mrf.mxu0
    %v950 = vadd.f32 0.0, %v949
    %v951 = vpop.f32.mrf.mxu0
    %v952 = vadd.f32 0.0, %v951
    %953 = vmatmul.bf16.gmra.mxu0 %v933
    %v954 = vpop.f32.mrf.mxu0
    %v955 = vadd.f32 0.0, %v954
    %v956 = vpop.f32.mrf.mxu0
    %v957 = vadd.f32 0.0, %v956
    %958 = vdwg.mxu0
    %v959 = vadd.f32 %v629, %v945
    %v960 = vadd.f32 %v630, %v947
    %v961 = vadd.f32 %v631, %v950
    %v962 = vadd.f32 %v632, %v952
    %v963 = vadd.f32 %v633, %v955
    %v964 = vadd.f32 %v634, %v957
    %v965 = vld [vmem:[%s3 + $0x6] sm:$0x1]
    %v966 = vperm.slane %v965, 0
    %v967 = vadd.f32 %v959, %v966
    %v968 = vadd.f32 %v960, %v966
    %v969 = vadd.f32 %v961, %v966
    %v970 = vadd.f32 %v962, %v966
    %v971 = vadd.f32 %v963, %v966
    %v972 = vadd.f32 %v964, %v966
    %v973 = vsel %vm118, %v967, 0.0
    %974 = vadd.xlane.f32.xlu0 %v973
    %v975 = vpop.xlane.xlu0 %974
    %v976 = vsel %vm118, %v968, 0.0
    %977 = vadd.xlane.f32.xlu0 %v976
    %v978 = vpop.xlane.xlu0 %977
    %v979 = vsel %vm118, %v969, 0.0
    %980 = vadd.xlane.f32.xlu0 %v979
    %v981 = vpop.xlane.xlu0 %980
    %v982 = vsel %vm118, %v970, 0.0
    %983 = vadd.xlane.f32.xlu0 %v982
    %v984 = vpop.xlane.xlu0 %983
    %v985 = vsel %vm118, %v971, 0.0
    %986 = vadd.xlane.f32.xlu0 %v985
    %v987 = vpop.xlane.xlu0 %986
    %v988 = vsel %vm118, %v972, 0.0
    %989 = vadd.xlane.f32.xlu0 %v988
    %v990 = vpop.xlane.xlu0 %989
    %v991 = vmul.f32 %v975, %v143
    %v992 = vmul.f32 %v978, %v143
    %v993 = vmul.f32 %v981, %v143
    %v994 = vmul.f32 %v984, %v143
    %v995 = vmul.f32 %v987, %v143
    %v996 = vmul.f32 %v990, %v143
    %v997 = vmul.f32 %v967, %v967
    %v998 = vmul.f32 %v968, %v968
    %v999 = vmul.f32 %v969, %v969
    %v1000 = vmul.f32 %v970, %v970
    %v1001 = vmul.f32 %v971, %v971
    %v1002 = vmul.f32 %v972, %v972
    %v1003 = vsel %vm118, %v997, 0.0
    %1004 = vadd.xlane.f32.xlu0 %v1003
    %v1005 = vpop.xlane.xlu0 %1004
    %v1006 = vsel %vm118, %v998, 0.0
    %1007 = vadd.xlane.f32.xlu0 %v1006
    %v1008 = vpop.xlane.xlu0 %1007
    %v1009 = vsel %vm118, %v999, 0.0
    %1010 = vadd.xlane.f32.xlu0 %v1009
    %v1011 = vpop.xlane.xlu0 %1010
    %v1012 = vsel %vm118, %v1000, 0.0
    %1013 = vadd.xlane.f32.xlu0 %v1012
    %v1014 = vpop.xlane.xlu0 %1013
    %v1015 = vsel %vm118, %v1001, 0.0
    %1016 = vadd.xlane.f32.xlu0 %v1015
    %v1017 = vpop.xlane.xlu0 %1016
    %v1018 = vsel %vm118, %v1002, 0.0
    %1019 = vadd.xlane.f32.xlu0 %v1018
    %v1020 = vpop.xlane.xlu0 %1019
    %v1021 = vmul.f32 %v1005, %v143
    %v1022 = vmul.f32 %v1008, %v143
    %v1023 = vmul.f32 %v1011, %v143
    %v1024 = vmul.f32 %v1014, %v143
    %v1025 = vmul.f32 %v1017, %v143
    %v1026 = vmul.f32 %v1020, %v143
    %v1027 = vmul.f32 %v991, %v991
    %v1028 = vmul.f32 %v992, %v992
    %v1029 = vmul.f32 %v993, %v993
    %v1030 = vmul.f32 %v994, %v994
    %v1031 = vmul.f32 %v995, %v995
    %v1032 = vmul.f32 %v996, %v996
    %v1033 = vsub.f32 %v1021, %v1027
    %v1034 = vsub.f32 %v1022, %v1028
    %v1035 = vsub.f32 %v1023, %v1029
    %v1036 = vsub.f32 %v1024, %v1030
    %v1037 = vsub.f32 %v1025, %v1031
    %v1038 = vsub.f32 %v1026, %v1032
    %v1039 = vsub.f32 %v967, %v991
    %v1040 = vsub.f32 %v968, %v992
    %v1041 = vsub.f32 %v969, %v993
    %v1042 = vsub.f32 %v970, %v994
    %v1043 = vsub.f32 %v971, %v995
    %v1044 = vsub.f32 %v972, %v996
    %v1045 = vadd.f32 %v1033, 1e-05
    %v1046 = vadd.f32 %v1034, 1e-05
    %v1047 = vadd.f32 %v1035, 1e-05
    %v1048 = vadd.f32 %v1036, 1e-05
    %v1049 = vadd.f32 %v1037, 1e-05
    %v1050 = vadd.f32 %v1038, 1e-05
    %v1051 = vrsqrt.pop %v1045
    %v1052 = vmul.f32 %v1051, %v1045
    %v1053 = vmul.f32 %v1052, %v1051
    %v1054 = vmul.f32 0.5, %v1053
    %v1055 = vsub.f32 1.5, %v1054
    %v1056 = vmul.f32 %v1051, %v1055
    %vm1057 = vweird.f32 %v1045
    %vm1058 = vweird.f32 %v1051
    %vm1059 = vmor %vm1057, %vm1058
    %v1060 = vsel %vm1059, %v1051, %v1056
    %v1061 = vrsqrt.pop %v1046
    %v1062 = vmul.f32 %v1061, %v1046
    %v1063 = vmul.f32 %v1062, %v1061
    %v1064 = vmul.f32 0.5, %v1063
    %v1065 = vsub.f32 1.5, %v1064
    %v1066 = vmul.f32 %v1061, %v1065
    %vm1067 = vweird.f32 %v1046
    %vm1068 = vweird.f32 %v1061
    %vm1069 = vmor %vm1067, %vm1068
    %v1070 = vsel %vm1069, %v1061, %v1066
    %v1071 = vrsqrt.pop %v1047
    %v1072 = vmul.f32 %v1071, %v1047
    %v1073 = vmul.f32 %v1072, %v1071
    %v1074 = vmul.f32 0.5, %v1073
    %v1075 = vsub.f32 1.5, %v1074
    %v1076 = vmul.f32 %v1071, %v1075
    %vm1077 = vweird.f32 %v1047
    %vm1078 = vweird.f32 %v1071
    %vm1079 = vmor %vm1077, %vm1078
    %v1080 = vsel %vm1079, %v1071, %v1076
    %v1081 = vrsqrt.pop %v1048
    %v1082 = vmul.f32 %v1081, %v1048
    %v1083 = vmul.f32 %v1082, %v1081
    %v1084 = vmul.f32 0.5, %v1083
    %v1085 = vsub.f32 1.5, %v1084
    %v1086 = vmul.f32 %v1081, %v1085
    %vm1087 = vweird.f32 %v1048
    %vm1088 = vweird.f32 %v1081
    %vm1089 = vmor %vm1087, %vm1088
    %v1090 = vsel %vm1089, %v1081, %v1086
    %v1091 = vrsqrt.pop %v1049
    %v1092 = vmul.f32 %v1091, %v1049
    %v1093 = vmul.f32 %v1092, %v1091
    %v1094 = vmul.f32 0.5, %v1093
    %v1095 = vsub.f32 1.5, %v1094
    %v1096 = vmul.f32 %v1091, %v1095
    %vm1097 = vweird.f32 %v1049
    %vm1098 = vweird.f32 %v1091
    %vm1099 = vmor %vm1097, %vm1098
    %v1100 = vsel %vm1099, %v1091, %v1096
    %v1101 = vrsqrt.pop %v1050
    %v1102 = vmul.f32 %v1101, %v1050
    %v1103 = vmul.f32 %v1102, %v1101
    %v1104 = vmul.f32 0.5, %v1103
    %v1105 = vsub.f32 1.5, %v1104
    %v1106 = vmul.f32 %v1101, %v1105
    %vm1107 = vweird.f32 %v1050
    %vm1108 = vweird.f32 %v1101
    %vm1109 = vmor %vm1107, %vm1108
    %v1110 = vsel %vm1109, %v1101, %v1106
    %v1111 = vmul.f32 %v1039, %v1060
    %v1112 = vmul.f32 %v1040, %v1070
    %v1113 = vmul.f32 %v1041, %v1080
    %v1114 = vmul.f32 %v1042, %v1090
    %v1115 = vmul.f32 %v1043, %v1100
    %v1116 = vmul.f32 %v1044, %v1110
    %v1117 = vld [vmem:[%s3 + $0x2] sm:$0x1]
    %v1118 = vperm.slane %v1117, 0
    %v1119 = vmul.f32 %v1111, %v1118
    %v1120 = vmul.f32 %v1112, %v1118
    %v1121 = vmul.f32 %v1113, %v1118
    %v1122 = vmul.f32 %v1114, %v1118
    %v1123 = vmul.f32 %v1115, %v1118
    %v1124 = vmul.f32 %v1116, %v1118
    %v1125 = vld [vmem:[%s3 + $0x3] sm:$0x1]
    %v1126 = vperm.slane %v1125, 0
    %v1127 = vadd.f32 %v1119, %v1126
    %v1128 = vadd.f32 %v1120, %v1126
    %v1129 = vadd.f32 %v1121, %v1126
    %v1130 = vadd.f32 %v1122, %v1126
    %v1131 = vadd.f32 %v1123, %v1126
    %v1132 = vadd.f32 %v1124, %v1126
    %v1133 = vld [vmem:[%s7] sm:$0xf]
    %v1134 = vld [vmem:[%s7 + $0x4] sm:$0xf]
    %v1135 = vld [vmem:[%s7 + $0x8] sm:$0xf]
    %v1136 = vld [vmem:[%s7 + $0xc] sm:$0xf]
    %v1137 = vpack.c.bf16 %v1128, %v1127
    %v1138 = vpack.c.bf16 %v1130, %v1129
    %v1139 = vpack.c.bf16 %v1132, %v1131
    %v1140 = vld [vmem:[%s3 + $0x7] sm:$0x1]
    %v1141 = vperm.slane %v1140, 0
    %v1146 = vunpack.c.l.b16 %v1133
    %v1147 = vunpack.c.l.b16 %v1134
    %v1148 = vunpack.c.l.b16 %v1135
    %v1149 = vunpack.c.l.b16 %v1136
    %v1150 = vpack.c.b16 %v1147, %v1146
    %v1151 = vpack.c.b16 %v1149, %v1148
    %v1155 = vsel %vm118, %v1137, 0
    %v1158 = vsel %vm118, %v1138, 0
    %v1161 = vsel %vm118, %v1139, 0
    %1163 = vmatpush.bf16.msra.mxu0 0
    %1164 = vmatpush.bf16.msra.mxu0 0
    %1165 = vmatpush.bf16.msra.mxu0 0
    %1166 = vmatpush.bf16.msra.mxu0 0
    %1167 = vmatpush.bf16.msra.mxu0 0
    %1168 = vmatpush.bf16.msra.mxu0 0
    %1169 = vmatpush.bf16.msra.mxu0 %v1151
    %1170 = vmatpush.bf16.msra.mxu0 %v1150
    %1171 = vmatmul.bf16.gmra.mxu0 %v1155
    %v1172 = vpop.f32.mrf.mxu0
    %v1173 = vadd.f32 %v1141, %v1172
    %v1174 = vpop.f32.mrf.mxu0
    %v1175 = vadd.f32 %v1141, %v1174
    %1176 = vmatmul.bf16.gmra.mxu0 %v1158
    %v1177 = vpop.f32.mrf.mxu0
    %v1178 = vadd.f32 %v1141, %v1177
    %v1179 = vpop.f32.mrf.mxu0
    %v1180 = vadd.f32 %v1141, %v1179
    %1181 = vmatmul.bf16.gmra.mxu0 %v1161
    %v1182 = vpop.f32.mrf.mxu0
    %v1183 = vadd.f32 %v1141, %v1182
    %v1184 = vpop.f32.mrf.mxu0
    %v1185 = vadd.f32 %v1141, %v1184
    %1186 = vdwg.mxu0
    %v1187 = vmul.f32 %v1173, %v1173
    %v1188 = vmul.f32 %v1175, %v1175
    %v1189 = vmul.f32 %v1178, %v1178
    %v1190 = vmul.f32 %v1180, %v1180
    %v1191 = vmul.f32 %v1183, %v1183
    %v1192 = vmul.f32 %v1185, %v1185
    %v1193 = vmul.f32 %v1173, %v1187
    %v1194 = vmul.f32 %v1175, %v1188
    %v1195 = vmul.f32 %v1178, %v1189
    %v1196 = vmul.f32 %v1180, %v1190
    %v1197 = vmul.f32 %v1183, %v1191
    %v1198 = vmul.f32 %v1185, %v1192
    %v1199 = vmul.f32 %v1193, 0.044715
    %v1200 = vmul.f32 %v1194, 0.044715
    %v1201 = vmul.f32 %v1195, 0.044715
    %v1202 = vmul.f32 %v1196, 0.044715
    %v1203 = vmul.f32 %v1197, 0.044715
    %v1204 = vmul.f32 %v1198, 0.044715
    %v1205 = vadd.f32 %v1173, %v1199
    %v1206 = vadd.f32 %v1175, %v1200
    %v1207 = vadd.f32 %v1178, %v1201
    %v1208 = vadd.f32 %v1180, %v1202
    %v1209 = vadd.f32 %v1183, %v1203
    %v1210 = vadd.f32 %v1185, %v1204
    %v1211 = vmul.f32 %v1205, 0.7978846
    %v1212 = vmul.f32 %v1206, 0.7978846
    %v1213 = vmul.f32 %v1207, 0.7978846
    %v1214 = vmul.f32 %v1208, 0.7978846
    %v1215 = vmul.f32 %v1209, 0.7978846
    %v1216 = vmul.f32 %v1210, 0.7978846
    %v1217 = vtanh.pop %v1211
    %v1218 = vtanh.pop %v1212
    %v1219 = vtanh.pop %v1213
    %v1220 = vtanh.pop %v1214
    %v1221 = vtanh.pop %v1215
    %v1222 = vtanh.pop %v1216
    %v1223 = vadd.f32 %v1217, 1.0
    %v1224 = vadd.f32 %v1218, 1.0
    %v1225 = vadd.f32 %v1219, 1.0
    %v1226 = vadd.f32 %v1220, 1.0
    %v1227 = vadd.f32 %v1221, 1.0
    %v1228 = vadd.f32 %v1222, 1.0
    %v1229 = vmul.f32 %v1223, 0.5
    %v1230 = vmul.f32 %v1224, 0.5
    %v1231 = vmul.f32 %v1225, 0.5
    %v1232 = vmul.f32 %v1226, 0.5
    %v1233 = vmul.f32 %v1227, 0.5
    %v1234 = vmul.f32 %v1228, 0.5
    %v1235 = vmul.f32 %v1173, %v1229
    %v1236 = vmul.f32 %v1175, %v1230
    %v1237 = vmul.f32 %v1178, %v1231
    %v1238 = vmul.f32 %v1180, %v1232
    %v1239 = vmul.f32 %v1183, %v1233
    %v1240 = vmul.f32 %v1185, %v1234
    %v1241 = vld [vmem:[%s8] sm:$0xf]
    %v1242 = vld [vmem:[%s8 + $0x4] sm:$0xf]
    %v1243 = vld [vmem:[%s8 + $0x8] sm:$0xf]
    %v1244 = vld [vmem:[%s8 + $0xc] sm:$0xf]
    %v1245 = vld [vmem:[%s8 + $0x10] sm:$0xf]
    %v1246 = vld [vmem:[%s8 + $0x14] sm:$0xf]
    %v1247 = vld [vmem:[%s8 + $0x18] sm:$0xf]
    %v1248 = vld [vmem:[%s8 + $0x1c] sm:$0xf]
    %v1249 = vpack.c.bf16 %v1236, %v1235
    %v1250 = vpack.c.bf16 %v1238, %v1237
    %v1251 = vpack.c.bf16 %v1240, %v1239
    %v1260 = vunpack.c.l.b16 %v1241
    %v1261 = vunpack.c.l.b16 %v1242
    %v1262 = vunpack.c.l.b16 %v1243
    %v1263 = vunpack.c.l.b16 %v1244
    %v1264 = vunpack.c.l.b16 %v1245
    %v1265 = vunpack.c.l.b16 %v1246
    %v1266 = vunpack.c.l.b16 %v1247
    %v1267 = vunpack.c.l.b16 %v1248
    %v1268 = vpack.c.b16 %v1261, %v1260
    %v1269 = vpack.c.b16 %v1263, %v1262
    %v1270 = vpack.c.b16 %v1265, %v1264
    %v1271 = vpack.c.b16 %v1267, %v1266
    %v1277 = vsel %vm84, %v1249, 0
    %v1280 = vsel %vm84, %v1250, 0
    %v1283 = vsel %vm84, %v1251, 0
    %1285 = vmatpush.bf16.msra.mxu0 0
    %1286 = vmatpush.bf16.msra.mxu0 0
    %1287 = vmatpush.bf16.msra.mxu0 0
    %1288 = vmatpush.bf16.msra.mxu0 0
    %1289 = vmatpush.bf16.msra.mxu0 %v1271
    %1290 = vmatpush.bf16.msra.mxu0 %v1270
    %1291 = vmatpush.bf16.msra.mxu0 %v1269
    %1292 = vmatpush.bf16.msra.mxu0 %v1268
    %1293 = vmatmul.bf16.gmra.mxu0 %v1277
    %v1294 = vpop.f32.mrf.mxu0
    %v1295 = vadd.f32 0.0, %v1294
    %v1296 = vpop.f32.mrf.mxu0
    %1297 = vmatmul.bf16.gmra.mxu0 %v1280
    %v1298 = vpop.f32.mrf.mxu0
    %v1299 = vpop.f32.mrf.mxu0
    %v1300 = vadd.f32 0.0, %v1299
    %1301 = vmatmul.bf16.gmra.mxu0 %v1283
    %v1302 = vpop.f32.mrf.mxu0
    %v1303 = vpop.f32.mrf.mxu0
    %1304 = vdwg.mxu0
    %v1305 = vadd.f32 %v967, %v1295
    %v1306 = vadd.f32 %v970, %v1300
    %v1307 = vld [vmem:[%s3 + $0x8] sm:$0x1]
    %v1308 = vperm.slane %v1307, 0
    %v1309 = vadd.f32 %v1305, %v1308
    %v1310 = vadd.f32 %v1306, %v1308
    %v1312 = vrot.slane %v1310, 7
    %vm1314 = vcmask 1040384
    %v1315 = vsel %vm1314, %v1309, %v1312
    %vm1316 = vcmask 254976
    %v1317 = vsel %vm1316, %v1315, 0.0
    %1318 = vadd.xlane.f32.xlu0 %v1317
    %v1319 = vpop.xlane.xlu0 %1318
    %v1320 = vmul.f32 %v1319, %v143
    %v1321 = vmul.f32 %v1315, %v1315
    %v1322 = vsel %vm1316, %v1321, 0.0
    %1323 = vadd.xlane.f32.xlu0 %v1322
    %v1324 = vpop.xlane.xlu0 %1323
    %v1325 = vmul.f32 %v1324, %v143
    %v1326 = vmul.f32 %v1320, %v1320
    %v1327 = vsub.f32 %v1325, %v1326
    %v1328 = vsub.f32 %v1315, %v1320
    %v1329 = vadd.f32 %v1327, 1e-05
    %v1330 = vrsqrt.pop %v1329
    %v1331 = vmul.f32 %v1330, %v1329
    %v1332 = vmul.f32 %v1331, %v1330
    %v1333 = vmul.f32 0.5, %v1332
    %v1334 = vsub.f32 1.5, %v1333
    %v1335 = vmul.f32 %v1330, %v1334
    %vm1336 = vweird.f32 %v1329
    %vm1337 = vweird.f32 %v1330
    %vm1338 = vmor %vm1336, %vm1337
    %v1339 = vsel %vm1338, %v1330, %v1335
    %v1340 = vmul.f32 %v1328, %v1339
    %v1341 = vld [vmem:[%s3 + $0x4] sm:$0x1]
    %v1342 = vperm.slane %v1341, 0
    %v1343 = vmul.f32 %v1340, %v1342
    %v1344 = vld [vmem:[%s3 + $0x5] sm:$0x1]
    %v1345 = vperm.slane %v1344, 0
    %v1346 = vadd.f32 %v1343, %v1345
    %v1347 = vld [vmem:[%s9] sm:$0xf]
    %v1348 = vld [vmem:[%s9 + $0x4] sm:$0xf]
    %v1349 = vld [vmem:[%s9 + $0x8] sm:$0xf]
    %v1350 = vld [vmem:[%s9 + $0xc] sm:$0xf]
    %v1351 = vpack.c.bf16 %v1346, %v1346
    %v1352 = vld [vmem:[%s3 + $0x9] sm:$0x1]
    %v1353 = vperm.slane %v1352, 0
    %v1358 = vunpack.c.l.b16 %v1347
    %v1359 = vunpack.c.l.b16 %v1348
    %v1360 = vunpack.c.l.b16 %v1349
    %v1361 = vunpack.c.l.b16 %v1350
    %v1362 = vpack.c.b16 %v1359, %v1358
    %v1363 = vpack.c.b16 %v1361, %v1360
    %v1367 = vsel %vm118, %v1351, 0
    %1369 = vmatpush.bf16.msra.mxu0 0
    %1370 = vmatpush.bf16.msra.mxu0 0
    %1371 = vmatpush.bf16.msra.mxu0 0
    %1372 = vmatpush.bf16.msra.mxu0 0
    %1373 = vmatpush.bf16.msra.mxu0 0
    %1374 = vmatpush.bf16.msra.mxu0 0
    %1375 = vmatpush.bf16.msra.mxu0 %v1363
    %1376 = vmatpush.bf16.msra.mxu0 %v1362
    %1377 = vmatmul.bf16.gmra.mxu0 %v1367
    %v1378 = vpop.f32.mrf.mxu0
    %v1379 = vadd.f32 %v1353, %v1378
    %v1380 = vpop.f32.mrf.mxu0
    %1381 = vdwg.mxu0
    %1382 = vst [vmem:[#allocation2] sm:$0x3] %v1379
    // Predicated region
    $region42: #{model_vit_forward.1} parent=1 // pred_check
      _
    $region43: #{model_vit_forward.1} parent=1 // pred_check_branch
      %1384 = sbr.rel (0) target = $region45
    $region44: #{model_vit_forward.1} parent=1 // pred_region
      %1386 = vsyncadd [#allocation3], 0
      %s1388 = sshll.u32 [#allocation2], 4
      %s1389 = int_to_ptr.vmem [resolvable:$true] %s1388
      %s1390 = sshll.u32 %s10, 4
      %s1391 = int_to_ptr.hbm [resolvable:$true] %s1390
      %1393 = dma.vmem_to_hbm [thread:$0]  %s1389, 32, %s1391, [#allocation3]
    $region45: #{model_vit_forward.1} parent=1 // pred_fallthru
      _
    // Predicated region
    $region46: #{model_vit_forward.1} parent=1 // pred_check
      _
    $region47: #{model_vit_forward.1} parent=1 // pred_check_branch
      %1395 = sbr.rel (0) target = $region49
    $region48: #{model_vit_forward.1} parent=1 // pred_region
      %1397 = dma.done [#allocation3], 32
    $region49: #{model_vit_forward.1} parent=1 // pred_fallthru
      _
    %1398 = vsyncpa [#allocation3], 1

</llo_original>
